<compile_context>
chip_gen: v6e
topology: v6e:2x2x1
jax: 0.10.0
libtpu: 0.0.40
codegen_flags: <defaults>
</compile_context>

<pallas_src>
import functools
import math

import jax
import jax.numpy as jnp
from jax.experimental import pallas as pl
from jax.experimental.pallas import tpu as pltpu


def _dsconv_kernel(x_ref, wd_ref, wp_ref, b_ref, o_ref, *, K, Bt):
    # kernel-view shapes:
    #   x_ref  (Bt, C_in, L)   bf16 activations (channels x length per batch)
    #   wd_ref (C_in, K)       f32 depthwise taps, one row per channel
    #   wp_ref (C_out, C_in)   bf16 pointwise (1x1) weights
    #   b_ref  (C_out, 1)      f32 pointwise bias
    #   o_ref  (Bt, C_out, L)  f32 output
    pad = K // 2
    L = x_ref.shape[2]

    wd = wd_ref[...]                                   # (C_in, K)   f32
    wp = wp_ref[...]                                   # (C_out, C_in) bf16
    bias = b_ref[...]                                  # (C_out, 1)  f32

    # Lane-index row: masks the circular wrap-around of pltpu.roll so the
    # depthwise conv sees zero padding (matches PyTorch padding=K//2).
    lane = jax.lax.broadcasted_iota(jnp.int32, (1, L), 1)
    # Per-tap (C_in, 1) weight columns (lane-broadcast by the VPU).
    wcol = [wd[:, k:k + 1] for k in range(K)]

    for b in range(Bt):
        x = x_ref[b].astype(jnp.float32)               # (C_in, L), f32 accum
        # Center tap (shift 0): no roll, no mask.
        acc = x * wcol[pad]
        # Remaining taps: XLU roll + boundary mask + VPU FMA (fully unrolled).
        for k in range(K):
            if k == pad:
                continue
            shift = pad - k        # rolled[c, l] == x[c, (l + (k - pad)) % L]
            rolled = pltpu.roll(x, shift % L, axis=1)
            if shift > 0:
                valid = lane >= shift          # zero-pad on the left edge
            else:
                valid = lane < L + shift       # zero-pad on the right edge
            acc = acc + jnp.where(valid, rolled, 0.0) * wcol[k]

        # Pointwise 1x1 conv: one MXU matmul contracting channels (bf16
        # operands, f32 accumulation); bias + ReLU fused into the epilogue.
        # Output last dim is L (lane-dense store for L % 128 == 0).
        out = jnp.dot(wp, acc.astype(jnp.bfloat16),
                      preferred_element_type=jnp.float32)
        o_ref[b] = jnp.maximum(out + bias, 0.0).astype(o_ref.dtype)


def _pick_batch_block(B, per_batch_bytes, budget_bytes=2 << 20, min_steps=4):
    """Largest Bt that divides B, keeps the per-step x block under
    `budget_bytes` (VMEM-safe on v7x's 64 MiB with double buffering), and --
    when B is large enough -- leaves >= min_steps grid steps so both v7x
    TensorCores get pipelined work."""
    best = 1
    for bt in range(1, B + 1):
        if B % bt:
            continue
        if bt * per_batch_bytes > budget_bytes:
            break
        if B >= min_steps and B // bt < min_steps:
            break
        best = bt
    return best


def depthwise_separable_conv(x, depthwise_weight, pointwise_weight,
                             pointwise_bias, *, batch_block=None):
    """x: [B, C_in, L] (PyTorch NCL). Returns [B, C_out, L] (f32).

    depthwise_weight: [C_in, 1, K]   (Conv1d, groups=C_in, bias=False)
    pointwise_weight: [C_out, C_in, 1]
    pointwise_bias:   [C_out]
    """
    B, C_in, L = x.shape
    K = depthwise_weight.shape[-1]
    C_out = pointwise_weight.shape[0]
    # TODO(synk): even kernel_size (PyTorch would produce length L+1) is not
    # supported; the module is used with odd K (e.g. 7), giving length L.
    assert K % 2 == 1, "only odd kernel_size supported"

    # bf16 activations + bf16 MXU operands, f32 accumulation, f32 output.
    x = x.astype(jnp.bfloat16)
    wd = depthwise_weight.reshape(C_in, K).astype(jnp.float32)
    wp = pointwise_weight.reshape(C_out, C_in).astype(jnp.bfloat16)
    bias = pointwise_bias.reshape(C_out, 1).astype(jnp.float32)

    if batch_block is None:
        batch_block = _pick_batch_block(B, per_batch_bytes=C_in * L * 2)
    Bt = batch_block
    assert B % Bt == 0, "batch_block must divide batch size"

    kernel = functools.partial(_dsconv_kernel, K=K, Bt=Bt)
    return pl.pallas_call(
        kernel,
        out_shape=jax.ShapeDtypeStruct((B, C_out, L), jnp.float32),
        grid_spec=pltpu.PrefetchScalarGridSpec(
            num_scalar_prefetch=0,
            grid=(B // Bt,),                       # Bt batch elements per step
            in_specs=[
                pl.BlockSpec((Bt, C_in, L), lambda i: (i, 0, 0)),
                pl.BlockSpec((C_in, K), lambda i: (0, 0)),
                pl.BlockSpec((C_out, C_in), lambda i: (0, 0)),
                pl.BlockSpec((C_out, 1), lambda i: (0, 0)),
            ],
            out_specs=pl.BlockSpec((Bt, C_out, L), lambda i: (i, 0, 0)),
        ),
        compiler_params=pltpu.CompilerParams(
            dimension_semantics=("parallel",)),    # batch blocks -> both cores
    )(x, wd, wp, bias)


def _reference(x, depthwise_weight, pointwise_weight, pointwise_bias):
    """Pure-JAX f32 mirror of the PyTorch forward (for correctness check)."""
    C_in = x.shape[1]
    K = depthwise_weight.shape[-1]
    pad = K // 2
    dw = jax.lax.conv_general_dilated(
        x.astype(jnp.float32), depthwise_weight.astype(jnp.float32),
        window_strides=(1,), padding=[(pad, pad)],
        dimension_numbers=("NCH", "OIH", "NCH"),
        feature_group_count=C_in,
        precision=jax.lax.Precision.HIGHEST)
    pw = jax.lax.conv_general_dilated(
        dw, pointwise_weight.astype(jnp.float32),
        window_strides=(1,), padding=[(0, 0)],
        dimension_numbers=("NCH", "OIH", "NCH"),
        precision=jax.lax.Precision.HIGHEST)
    return jax.nn.relu(pw + pointwise_bias.astype(jnp.float32)[None, :, None])


if __name__ == "__main__":
    # Small but TPU-friendly shapes (QANet-style: d_model=128, kernel_size=7);
    # L = 128 keeps the output store lane-dense.
    B, C_in, C_out, L, K = 2, 128, 128, 128, 7

    key = jax.random.PRNGKey(0)
    k_x, k_dw, k_pw, k_b = jax.random.split(key, 4)

    x = jax.random.normal(k_x, (B, C_in, L), dtype=jnp.float32)

    # Parameters with PyTorch Conv1d shapes and default-init-like scales.
    bd = 1.0 / math.sqrt(1 * K)            # depthwise fan_in = 1 * K
    depthwise_weight = jax.random.uniform(k_dw, (C_in, 1, K), jnp.float32, -bd, bd)
    bp = 1.0 / math.sqrt(C_in * 1)         # pointwise fan_in = C_in * 1
    pointwise_weight = jax.random.uniform(k_pw, (C_out, C_in, 1), jnp.float32, -bp, bp)
    pointwise_bias = jax.random.uniform(k_b, (C_out,), jnp.float32, -bp, bp)

    out = depthwise_separable_conv(x, depthwise_weight, pointwise_weight, pointwise_bias)
    out = jax.block_until_ready(out)

    ref = _reference(x, depthwise_weight, pointwise_weight, pointwise_bias)
    assert out.shape == (B, C_out, L)
    assert bool(jnp.all(jnp.isfinite(out)))
    # bf16 activations / MXU operands with f32 accumulation: ~0.3-0.5% typical
    # relative error vs the pure-f32 reference.
    max_err = float(jnp.max(jnp.abs(out - ref)))
    assert bool(jnp.allclose(out, ref, rtol=2e-2, atol=2e-2)), max_err

    print("KERNEL_OK")
</pallas_src>

<mosaic_0001>
module attributes {stable_mosaic.version = 11 : i64} {
  func.func @_dsconv_kernel(%arg0: i32, %arg1: memref<2x128x128xbf16, #tpu.memory_space<vmem>>, %arg2: memref<128x7xf32, #tpu.memory_space<vmem>>, %arg3: memref<128x128xbf16, #tpu.memory_space<vmem>>, %arg4: memref<128x1xf32, #tpu.memory_space<vmem>>, %arg5: memref<2x128x128xf32, #tpu.memory_space<vmem>>) attributes {dimension_semantics = [#tpu.dimension_semantics<parallel>], iteration_bounds = array<i64: 1>, scalar_prefetch = 0 : i64, scratch_operands = 0 : i64, tpu.core_type = #tpu.core_type<tc>, window_params = [{transform_indices = @transform_0, window_bounds = array<i64: 2, 128, 128>}, {pipeline_mode = #tpu.pipeline_mode<synchronous>, transform_indices = @transform_1, window_bounds = array<i64: 128, 7>}, {pipeline_mode = #tpu.pipeline_mode<synchronous>, transform_indices = @transform_2, window_bounds = array<i64: 128, 128>}, {pipeline_mode = #tpu.pipeline_mode<synchronous>, transform_indices = @transform_3, window_bounds = array<i64: 128, 1>}, {transform_indices = @transform_4, window_bounds = array<i64: 2, 128, 128>}]} {
    %c0 = arith.constant 0 : index
    %c0_0 = arith.constant 0 : index
    %0 = vector.load %arg2[%c0, %c0_0] : memref<128x7xf32, #tpu.memory_space<vmem>>, vector<128x7xf32>
    %c0_1 = arith.constant 0 : index
    %c0_2 = arith.constant 0 : index
    %1 = vector.load %arg3[%c0_1, %c0_2] : memref<128x128xbf16, #tpu.memory_space<vmem>>, vector<128x128xbf16>
    %c0_3 = arith.constant 0 : index
    %c0_4 = arith.constant 0 : index
    %2 = vector.load %arg4[%c0_3, %c0_4] : memref<128x1xf32, #tpu.memory_space<vmem>>, vector<128x1xf32>
    %3 = tpu.iota {dimensions = array<i32: 1>} : vector<1x128xi32>
    %4 = vector.extract_strided_slice %0 {offsets = [0, 0], sizes = [128, 1], strides = [1, 1]} : vector<128x7xf32> to vector<128x1xf32>
    %5 = vector.extract_strided_slice %0 {offsets = [0, 1], sizes = [128, 1], strides = [1, 1]} : vector<128x7xf32> to vector<128x1xf32>
    %6 = vector.extract_strided_slice %0 {offsets = [0, 2], sizes = [128, 1], strides = [1, 1]} : vector<128x7xf32> to vector<128x1xf32>
    %7 = vector.extract_strided_slice %0 {offsets = [0, 3], sizes = [128, 1], strides = [1, 1]} : vector<128x7xf32> to vector<128x1xf32>
    %8 = vector.extract_strided_slice %0 {offsets = [0, 4], sizes = [128, 1], strides = [1, 1]} : vector<128x7xf32> to vector<128x1xf32>
    %9 = vector.extract_strided_slice %0 {offsets = [0, 5], sizes = [128, 1], strides = [1, 1]} : vector<128x7xf32> to vector<128x1xf32>
    %10 = vector.extract_strided_slice %0 {offsets = [0, 6], sizes = [128, 1], strides = [1, 1]} : vector<128x7xf32> to vector<128x1xf32>
    %c0_5 = arith.constant 0 : index
    %c0_6 = arith.constant 0 : index
    %c0_7 = arith.constant 0 : index
    %11 = vector.load %arg1[%c0_5, %c0_6, %c0_7] : memref<2x128x128xbf16, #tpu.memory_space<vmem>>, vector<1x128x128xbf16>
    %12 = vector.shape_cast %11 : vector<1x128x128xbf16> to vector<128x128xbf16>
    %13 = arith.extf %12 : vector<128x128xbf16> to vector<128x128xf32>
    %14 = vector.broadcast %7 : vector<128x1xf32> to vector<128x128xf32>
    %15 = arith.mulf %13, %14 : vector<128x128xf32>
    %c3_i32 = arith.constant 3 : i32
    %16 = tpu.dynamic_rotate %13 by %c3_i32 dim 1 : vector<128x128xf32>, i32 -> vector<128x128xf32>
    %c3_i32_8 = arith.constant 3 : i32
    %17 = vector.broadcast %c3_i32_8 : i32 to vector<1x128xi32>
    %18 = arith.cmpi sge, %3, %17 : vector<1x128xi32>
    %cst = arith.constant 0.000000e+00 : f32
    %19 = vector.shape_cast %18 : vector<1x128xi1> to vector<1x128xi1>
    %20 = vector.broadcast %19 : vector<1x128xi1> to vector<128x128xi1>
    %21 = vector.broadcast %cst : f32 to vector<128x128xf32>
    %22 = arith.select %20, %16, %21 : vector<128x128xi1>, vector<128x128xf32>
    %23 = vector.broadcast %4 : vector<128x1xf32> to vector<128x128xf32>
    %24 = arith.mulf %22, %23 : vector<128x128xf32>
    %25 = arith.addf %15, %24 : vector<128x128xf32>
    %c2_i32 = arith.constant 2 : i32
    %26 = tpu.dynamic_rotate %13 by %c2_i32 dim 1 : vector<128x128xf32>, i32 -> vector<128x128xf32>
    %c2_i32_9 = arith.constant 2 : i32
    %27 = vector.broadcast %c2_i32_9 : i32 to vector<1x128xi32>
    %28 = arith.cmpi sge, %3, %27 : vector<1x128xi32>
    %cst_10 = arith.constant 0.000000e+00 : f32
    %29 = vector.shape_cast %28 : vector<1x128xi1> to vector<1x128xi1>
    %30 = vector.broadcast %29 : vector<1x128xi1> to vector<128x128xi1>
    %31 = vector.broadcast %cst_10 : f32 to vector<128x128xf32>
    %32 = arith.select %30, %26, %31 : vector<128x128xi1>, vector<128x128xf32>
    %33 = vector.broadcast %5 : vector<128x1xf32> to vector<128x128xf32>
    %34 = arith.mulf %32, %33 : vector<128x128xf32>
    %35 = arith.addf %25, %34 : vector<128x128xf32>
    %c1_i32 = arith.constant 1 : i32
    %36 = tpu.dynamic_rotate %13 by %c1_i32 dim 1 : vector<128x128xf32>, i32 -> vector<128x128xf32>
    %c1_i32_11 = arith.constant 1 : i32
    %37 = vector.broadcast %c1_i32_11 : i32 to vector<1x128xi32>
    %38 = arith.cmpi sge, %3, %37 : vector<1x128xi32>
    %cst_12 = arith.constant 0.000000e+00 : f32
    %39 = vector.shape_cast %38 : vector<1x128xi1> to vector<1x128xi1>
    %40 = vector.broadcast %39 : vector<1x128xi1> to vector<128x128xi1>
    %41 = vector.broadcast %cst_12 : f32 to vector<128x128xf32>
    %42 = arith.select %40, %36, %41 : vector<128x128xi1>, vector<128x128xf32>
    %43 = vector.broadcast %6 : vector<128x1xf32> to vector<128x128xf32>
    %44 = arith.mulf %42, %43 : vector<128x128xf32>
    %45 = arith.addf %35, %44 : vector<128x128xf32>
    %c127_i32 = arith.constant 127 : i32
    %46 = tpu.dynamic_rotate %13 by %c127_i32 dim 1 : vector<128x128xf32>, i32 -> vector<128x128xf32>
    %c127_i32_13 = arith.constant 127 : i32
    %47 = vector.broadcast %c127_i32_13 : i32 to vector<1x128xi32>
    %48 = arith.cmpi slt, %3, %47 : vector<1x128xi32>
    %cst_14 = arith.constant 0.000000e+00 : f32
    %49 = vector.shape_cast %48 : vector<1x128xi1> to vector<1x128xi1>
    %50 = vector.broadcast %49 : vector<1x128xi1> to vector<128x128xi1>
    %51 = vector.broadcast %cst_14 : f32 to vector<128x128xf32>
    %52 = arith.select %50, %46, %51 : vector<128x128xi1>, vector<128x128xf32>
    %53 = vector.broadcast %8 : vector<128x1xf32> to vector<128x128xf32>
    %54 = arith.mulf %52, %53 : vector<128x128xf32>
    %55 = arith.addf %45, %54 : vector<128x128xf32>
    %c126_i32 = arith.constant 126 : i32
    %56 = tpu.dynamic_rotate %13 by %c126_i32 dim 1 : vector<128x128xf32>, i32 -> vector<128x128xf32>
    %c126_i32_15 = arith.constant 126 : i32
    %57 = vector.broadcast %c126_i32_15 : i32 to vector<1x128xi32>
    %58 = arith.cmpi slt, %3, %57 : vector<1x128xi32>
    %cst_16 = arith.constant 0.000000e+00 : f32
    %59 = vector.shape_cast %58 : vector<1x128xi1> to vector<1x128xi1>
    %60 = vector.broadcast %59 : vector<1x128xi1> to vector<128x128xi1>
    %61 = vector.broadcast %cst_16 : f32 to vector<128x128xf32>
    %62 = arith.select %60, %56, %61 : vector<128x128xi1>, vector<128x128xf32>
    %63 = vector.broadcast %9 : vector<128x1xf32> to vector<128x128xf32>
    %64 = arith.mulf %62, %63 : vector<128x128xf32>
    %65 = arith.addf %55, %64 : vector<128x128xf32>
    %c125_i32 = arith.constant 125 : i32
    %66 = tpu.dynamic_rotate %13 by %c125_i32 dim 1 : vector<128x128xf32>, i32 -> vector<128x128xf32>
    %c125_i32_17 = arith.constant 125 : i32
    %67 = vector.broadcast %c125_i32_17 : i32 to vector<1x128xi32>
    %68 = arith.cmpi slt, %3, %67 : vector<1x128xi32>
    %cst_18 = arith.constant 0.000000e+00 : f32
    %69 = vector.shape_cast %68 : vector<1x128xi1> to vector<1x128xi1>
    %70 = vector.broadcast %69 : vector<1x128xi1> to vector<128x128xi1>
    %71 = vector.broadcast %cst_18 : f32 to vector<128x128xf32>
    %72 = arith.select %70, %66, %71 : vector<128x128xi1>, vector<128x128xf32>
    %73 = vector.broadcast %10 : vector<128x1xf32> to vector<128x128xf32>
    %74 = arith.mulf %72, %73 : vector<128x128xf32>
    %75 = arith.addf %65, %74 : vector<128x128xf32>
    %76 = arith.truncf %75 : vector<128x128xf32> to vector<128x128xbf16>
    %cst_19 = arith.constant dense<0.000000e+00> : vector<128x128xf32>
    %77 = tpu.matmul %1, %76, %cst_19 {dimension_numbers = #tpu.dot_dimension_numbers<[1], [0], [0], [1], [0, 0, 1, 1], [], []>} : vector<128x128xbf16>, vector<128x128xbf16>, vector<128x128xf32> -> vector<128x128xf32>
    %78 = vector.broadcast %2 : vector<128x1xf32> to vector<128x128xf32>
    %79 = arith.addf %77, %78 : vector<128x128xf32>
    %cst_20 = arith.constant 0.000000e+00 : f32
    %80 = vector.broadcast %cst_20 : f32 to vector<128x128xf32>
    %81 = arith.maximumf %79, %80 : vector<128x128xf32>
    %c0_21 = arith.constant 0 : index
    %c0_22 = arith.constant 0 : index
    %c0_23 = arith.constant 0 : index
    %82 = vector.load %arg5[%c0_21, %c0_22, %c0_23] : memref<2x128x128xf32, #tpu.memory_space<vmem>>, vector<1x128x128xf32>
    %83 = vector.shape_cast %82 : vector<1x128x128xf32> to vector<128x128xf32>
    %84 = vector.shape_cast %81 : vector<128x128xf32> to vector<1x128x128xf32>
    tpu.vector_store %arg5[%c0_21, %c0_22, %c0_23], %84 {strides = array<i32>} : memref<2x128x128xf32, #tpu.memory_space<vmem>>, vector<1x128x128xf32>,
    %c1 = arith.constant 1 : index
    %c0_24 = arith.constant 0 : index
    %c0_25 = arith.constant 0 : index
    %85 = vector.load %arg1[%c1, %c0_24, %c0_25] : memref<2x128x128xbf16, #tpu.memory_space<vmem>>, vector<1x128x128xbf16>
    %86 = vector.shape_cast %85 : vector<1x128x128xbf16> to vector<128x128xbf16>
    %87 = arith.extf %86 : vector<128x128xbf16> to vector<128x128xf32>
    %88 = vector.broadcast %7 : vector<128x1xf32> to vector<128x128xf32>
    %89 = arith.mulf %87, %88 : vector<128x128xf32>
    %c3_i32_26 = arith.constant 3 : i32
    %90 = tpu.dynamic_rotate %87 by %c3_i32_26 dim 1 : vector<128x128xf32>, i32 -> vector<128x128xf32>
    %c3_i32_27 = arith.constant 3 : i32
    %91 = vector.broadcast %c3_i32_27 : i32 to vector<1x128xi32>
    %92 = arith.cmpi sge, %3, %91 : vector<1x128xi32>
    %cst_28 = arith.constant 0.000000e+00 : f32
    %93 = vector.shape_cast %92 : vector<1x128xi1> to vector<1x128xi1>
    %94 = vector.broadcast %93 : vector<1x128xi1> to vector<128x128xi1>
    %95 = vector.broadcast %cst_28 : f32 to vector<128x128xf32>
    %96 = arith.select %94, %90, %95 : vector<128x128xi1>, vector<128x128xf32>
    %97 = vector.broadcast %4 : vector<128x1xf32> to vector<128x128xf32>
    %98 = arith.mulf %96, %97 : vector<128x128xf32>
    %99 = arith.addf %89, %98 : vector<128x128xf32>
    %c2_i32_29 = arith.constant 2 : i32
    %100 = tpu.dynamic_rotate %87 by %c2_i32_29 dim 1 : vector<128x128xf32>, i32 -> vector<128x128xf32>
    %c2_i32_30 = arith.constant 2 : i32
    %101 = vector.broadcast %c2_i32_30 : i32 to vector<1x128xi32>
    %102 = arith.cmpi sge, %3, %101 : vector<1x128xi32>
    %cst_31 = arith.constant 0.000000e+00 : f32
    %103 = vector.shape_cast %102 : vector<1x128xi1> to vector<1x128xi1>
    %104 = vector.broadcast %103 : vector<1x128xi1> to vector<128x128xi1>
    %105 = vector.broadcast %cst_31 : f32 to vector<128x128xf32>
    %106 = arith.select %104, %100, %105 : vector<128x128xi1>, vector<128x128xf32>
    %107 = vector.broadcast %5 : vector<128x1xf32> to vector<128x128xf32>
    %108 = arith.mulf %106, %107 : vector<128x128xf32>
    %109 = arith.addf %99, %108 : vector<128x128xf32>
    %c1_i32_32 = arith.constant 1 : i32
    %110 = tpu.dynamic_rotate %87 by %c1_i32_32 dim 1 : vector<128x128xf32>, i32 -> vector<128x128xf32>
    %c1_i32_33 = arith.constant 1 : i32
    %111 = vector.broadcast %c1_i32_33 : i32 to vector<1x128xi32>
    %112 = arith.cmpi sge, %3, %111 : vector<1x128xi32>
    %cst_34 = arith.constant 0.000000e+00 : f32
    %113 = vector.shape_cast %112 : vector<1x128xi1> to vector<1x128xi1>
    %114 = vector.broadcast %113 : vector<1x128xi1> to vector<128x128xi1>
    %115 = vector.broadcast %cst_34 : f32 to vector<128x128xf32>
    %116 = arith.select %114, %110, %115 : vector<128x128xi1>, vector<128x128xf32>
    %117 = vector.broadcast %6 : vector<128x1xf32> to vector<128x128xf32>
    %118 = arith.mulf %116, %117 : vector<128x128xf32>
    %119 = arith.addf %109, %118 : vector<128x128xf32>
    %c127_i32_35 = arith.constant 127 : i32
    %120 = tpu.dynamic_rotate %87 by %c127_i32_35 dim 1 : vector<128x128xf32>, i32 -> vector<128x128xf32>
    %c127_i32_36 = arith.constant 127 : i32
    %121 = vector.broadcast %c127_i32_36 : i32 to vector<1x128xi32>
    %122 = arith.cmpi slt, %3, %121 : vector<1x128xi32>
    %cst_37 = arith.constant 0.000000e+00 : f32
    %123 = vector.shape_cast %122 : vector<1x128xi1> to vector<1x128xi1>
    %124 = vector.broadcast %123 : vector<1x128xi1> to vector<128x128xi1>
    %125 = vector.broadcast %cst_37 : f32 to vector<128x128xf32>
    %126 = arith.select %124, %120, %125 : vector<128x128xi1>, vector<128x128xf32>
    %127 = vector.broadcast %8 : vector<128x1xf32> to vector<128x128xf32>
    %128 = arith.mulf %126, %127 : vector<128x128xf32>
    %129 = arith.addf %119, %128 : vector<128x128xf32>
    %c126_i32_38 = arith.constant 126 : i32
    %130 = tpu.dynamic_rotate %87 by %c126_i32_38 dim 1 : vector<128x128xf32>, i32 -> vector<128x128xf32>
    %c126_i32_39 = arith.constant 126 : i32
    %131 = vector.broadcast %c126_i32_39 : i32 to vector<1x128xi32>
    %132 = arith.cmpi slt, %3, %131 : vector<1x128xi32>
    %cst_40 = arith.constant 0.000000e+00 : f32
    %133 = vector.shape_cast %132 : vector<1x128xi1> to vector<1x128xi1>
    %134 = vector.broadcast %133 : vector<1x128xi1> to vector<128x128xi1>
    %135 = vector.broadcast %cst_40 : f32 to vector<128x128xf32>
    %136 = arith.select %134, %130, %135 : vector<128x128xi1>, vector<128x128xf32>
    %137 = vector.broadcast %9 : vector<128x1xf32> to vector<128x128xf32>
    %138 = arith.mulf %136, %137 : vector<128x128xf32>
    %139 = arith.addf %129, %138 : vector<128x128xf32>
    %c125_i32_41 = arith.constant 125 : i32
    %140 = tpu.dynamic_rotate %87 by %c125_i32_41 dim 1 : vector<128x128xf32>, i32 -> vector<128x128xf32>
    %c125_i32_42 = arith.constant 125 : i32
    %141 = vector.broadcast %c125_i32_42 : i32 to vector<1x128xi32>
    %142 = arith.cmpi slt, %3, %141 : vector<1x128xi32>
    %cst_43 = arith.constant 0.000000e+00 : f32
    %143 = vector.shape_cast %142 : vector<1x128xi1> to vector<1x128xi1>
    %144 = vector.broadcast %143 : vector<1x128xi1> to vector<128x128xi1>
    %145 = vector.broadcast %cst_43 : f32 to vector<128x128xf32>
    %146 = arith.select %144, %140, %145 : vector<128x128xi1>, vector<128x128xf32>
    %147 = vector.broadcast %10 : vector<128x1xf32> to vector<128x128xf32>
    %148 = arith.mulf %146, %147 : vector<128x128xf32>
    %149 = arith.addf %139, %148 : vector<128x128xf32>
    %150 = arith.truncf %149 : vector<128x128xf32> to vector<128x128xbf16>
    %cst_44 = arith.constant dense<0.000000e+00> : vector<128x128xf32>
    %151 = tpu.matmul %1, %150, %cst_44 {dimension_numbers = #tpu.dot_dimension_numbers<[1], [0], [0], [1], [0, 0, 1, 1], [], []>} : vector<128x128xbf16>, vector<128x128xbf16>, vector<128x128xf32> -> vector<128x128xf32>
    %152 = vector.broadcast %2 : vector<128x1xf32> to vector<128x128xf32>
    %153 = arith.addf %151, %152 : vector<128x128xf32>
    %cst_45 = arith.constant 0.000000e+00 : f32
    %154 = vector.broadcast %cst_45 : f32 to vector<128x128xf32>
    %155 = arith.maximumf %153, %154 : vector<128x128xf32>
    %c1_46 = arith.constant 1 : index
    %c0_47 = arith.constant 0 : index
    %c0_48 = arith.constant 0 : index
    %156 = vector.load %arg5[%c1_46, %c0_47, %c0_48] : memref<2x128x128xf32, #tpu.memory_space<vmem>>, vector<1x128x128xf32>
    %157 = vector.shape_cast %156 : vector<1x128x128xf32> to vector<128x128xf32>
    %158 = vector.shape_cast %155 : vector<128x128xf32> to vector<1x128x128xf32>
    tpu.vector_store %arg5[%c1_46, %c0_47, %c0_48], %158 {strides = array<i32>} : memref<2x128x128xf32, #tpu.memory_space<vmem>>, vector<1x128x128xf32>,
    return
  }
  func.func @transform_0(%arg0: i32) -> (i32, i32, i32) {
    %c0_i32 = arith.constant 0 : i32
    %c0_i32_0 = arith.constant 0 : i32
    %c0_i32_1 = arith.constant 0 : i32
    return %arg0, %c0_i32, %c0_i32_0 : i32, i32, i32
  }
  func.func @transform_1(%arg0: i32) -> (i32, i32) {
    %c0_i32 = arith.constant 0 : i32
    %c0_i32_0 = arith.constant 0 : i32
    %c0_i32_1 = arith.constant 0 : i32
    return %c0_i32, %c0_i32_0 : i32, i32
  }
  func.func @transform_2(%arg0: i32) -> (i32, i32) {
    %c0_i32 = arith.constant 0 : i32
    %c0_i32_0 = arith.constant 0 : i32
    %c0_i32_1 = arith.constant 0 : i32
    return %c0_i32, %c0_i32_0 : i32, i32
  }
  func.func @transform_3(%arg0: i32) -> (i32, i32) {
    %c0_i32 = arith.constant 0 : i32
    %c0_i32_0 = arith.constant 0 : i32
    %c0_i32_1 = arith.constant 0 : i32
    return %c0_i32, %c0_i32_0 : i32, i32
  }
  func.func @transform_4(%arg0: i32) -> (i32, i32, i32) {
    %c0_i32 = arith.constant 0 : i32
    %c0_i32_0 = arith.constant 0 : i32
    %c0_i32_1 = arith.constant 0 : i32
    return %arg0, %c0_i32, %c0_i32_0 : i32, i32, i32
  }
}

</mosaic_0001>

<llo_original>
// kernel: tpu_custom_call.1
$region0: #{tpu_custom_call.1}
  #allocation0 [shape = 'u32[]', space=smem, size = 0x4, offset = 0x4, fixed_abs, tag = 'smem constant byte address 0x4 - core index']
  #allocation1 [shape = 'u32[144,128]{1,0:T(1,128)}', space=vmem, size = 0x12000, scoped, tag = 'internal scratch']
  %s0 = inlined_call_operand.vmem [shape: bf16[2,128,128], index: 0, kind: input, shape index: {}]
  %s1 = inlined_call_operand.vmem [shape: f32[128,7], index: 1, kind: input, shape index: {}]
  %s2 = inlined_call_operand.vmem [shape: bf16[128,128], index: 2, kind: input, shape index: {}]
  %s3 = inlined_call_operand.vmem [shape: f32[128,1], index: 3, kind: input, shape index: {}]
  %s4 = inlined_call_operand.hbm [shape: f32[2,128,128], index: 4, kind: output, shape index: {}]
  %s5 = sld [smem:[#allocation0]]
  $region26: #{tpu_custom_call.1} parent=0
    _
  %s7 = ssub.s32 1, %s5
  %s8 = scalar_select 0, %s7, %s5
  $region1: #{tpu_custom_call.1} parent=0
    #allocation2 [shape = 'u8[131072]{0}', space=vmem, size = 0x20000, scoped, tag = 'output window, operand 0, single buffered']
    #allocation3 [shape = 's32[1]{0}', space=sflag, size = 0x4, scoped, tag = 'scoped memory for tpu_custom_call.1']
    %9 = vsyncpa [#allocation3], 0
    // Predicated region
    $region2: #{tpu_custom_call.1} parent=1 // pred_check
      _
    $region3: #{tpu_custom_call.1} parent=1 // pred_check_branch
      %11 = sbr.rel (0) target = $region5
    $region4: #{tpu_custom_call.1} parent=1 // pred_region
      _
    $region5: #{tpu_custom_call.1} parent=1 // pred_fallthru
      _
    // Predicated region
    $region6: #{tpu_custom_call.1} parent=1 // pred_check
      _
    $region7: #{tpu_custom_call.1} parent=1 // pred_check_branch
      %13 = sbr.rel (0) target = $region9
    $region8: #{tpu_custom_call.1} parent=1 // pred_region
      _
    $region9: #{tpu_custom_call.1} parent=1 // pred_fallthru
      _
    // Predicated region
    $region10: #{tpu_custom_call.1} parent=1 // pred_check
      _
    $region11: #{tpu_custom_call.1} parent=1 // pred_check_branch
      %15 = sbr.rel (0) target = $region13
    $region12: #{tpu_custom_call.1} parent=1 // pred_region
      _
    $region13: #{tpu_custom_call.1} parent=1 // pred_fallthru
      _
    // Predicated region
    $region14: #{tpu_custom_call.1} parent=1 // pred_check
      _
    $region15: #{tpu_custom_call.1} parent=1 // pred_check_branch
      %17 = sbr.rel (0) target = $region17
    $region16: #{tpu_custom_call.1} parent=1 // pred_region
      _
    $region17: #{tpu_custom_call.1} parent=1 // pred_fallthru
      _
    %v19 = vld [vmem:[%s1] sm:$0xff]
    %v20 = vld [vmem:[%s1 + $0x8] sm:$0xff]
    %v21 = vld [vmem:[%s1 + $0x10] sm:$0xff]
    %v22 = vld [vmem:[%s1 + $0x18] sm:$0xff]
    %v23 = vld [vmem:[%s1 + $0x20] sm:$0xff]
    %v24 = vld [vmem:[%s1 + $0x28] sm:$0xff]
    %v25 = vld [vmem:[%s1 + $0x30] sm:$0xff]
    %v26 = vld [vmem:[%s1 + $0x38] sm:$0xff]
    %v27 = vld [vmem:[%s1 + $0x40] sm:$0xff]
    %v28 = vld [vmem:[%s1 + $0x48] sm:$0xff]
    %v29 = vld [vmem:[%s1 + $0x50] sm:$0xff]
    %v30 = vld [vmem:[%s1 + $0x58] sm:$0xff]
    %v31 = vld [vmem:[%s1 + $0x60] sm:$0xff]
    %v32 = vld [vmem:[%s1 + $0x68] sm:$0xff]
    %v33 = vld [vmem:[%s1 + $0x70] sm:$0xff]
    %v34 = vld [vmem:[%s1 + $0x78] sm:$0xff]
    %v35 = vld [vmem:[%s2] sm:$0xf]
    %v36 = vld [vmem:[%s2 + $0x4] sm:$0xf]
    %v37 = vld [vmem:[%s2 + $0x8] sm:$0xf]
    %v38 = vld [vmem:[%s2 + $0xc] sm:$0xf]
    %v39 = vld [vmem:[%s2 + $0x10] sm:$0xf]
    %v40 = vld [vmem:[%s2 + $0x14] sm:$0xf]
    %v41 = vld [vmem:[%s2 + $0x18] sm:$0xf]
    %v42 = vld [vmem:[%s2 + $0x1c] sm:$0xf]
    %v43 = vld [vmem:[%s2 + $0x20] sm:$0xf]
    %v44 = vld [vmem:[%s2 + $0x24] sm:$0xf]
    %v45 = vld [vmem:[%s2 + $0x28] sm:$0xf]
    %v46 = vld [vmem:[%s2 + $0x2c] sm:$0xf]
    %v47 = vld [vmem:[%s2 + $0x30] sm:$0xf]
    %v48 = vld [vmem:[%s2 + $0x34] sm:$0xf]
    %v49 = vld [vmem:[%s2 + $0x38] sm:$0xf]
    %v50 = vld [vmem:[%s2 + $0x3c] sm:$0xf]
    %v51 = vld [vmem:[%s3] sm:$0xff]
    %v52 = vld [vmem:[%s3 + $0x8] sm:$0xff]
    %v53 = vld [vmem:[%s3 + $0x10] sm:$0xff]
    %v54 = vld [vmem:[%s3 + $0x18] sm:$0xff]
    %v55 = vld [vmem:[%s3 + $0x20] sm:$0xff]
    %v56 = vld [vmem:[%s3 + $0x28] sm:$0xff]
    %v57 = vld [vmem:[%s3 + $0x30] sm:$0xff]
    %v58 = vld [vmem:[%s3 + $0x38] sm:$0xff]
    %v59 = vld [vmem:[%s3 + $0x40] sm:$0xff]
    %v60 = vld [vmem:[%s3 + $0x48] sm:$0xff]
    %v61 = vld [vmem:[%s3 + $0x50] sm:$0xff]
    %v62 = vld [vmem:[%s3 + $0x58] sm:$0xff]
    %v63 = vld [vmem:[%s3 + $0x60] sm:$0xff]
    %v64 = vld [vmem:[%s3 + $0x68] sm:$0xff]
    %v65 = vld [vmem:[%s3 + $0x70] sm:$0xff]
    %v66 = vld [vmem:[%s3 + $0x78] sm:$0xff]
    %v67 = vlaneseq
    %v68 = vand.u32 %v67, 127
    %v69 = vld [vmem:[%s0] sm:$0xf]
    %v70 = vld [vmem:[%s0 + $0x4] sm:$0xf]
    %v71 = vld [vmem:[%s0 + $0x8] sm:$0xf]
    %v72 = vld [vmem:[%s0 + $0xc] sm:$0xf]
    %v73 = vld [vmem:[%s0 + $0x10] sm:$0xf]
    %v74 = vld [vmem:[%s0 + $0x14] sm:$0xf]
    %v75 = vld [vmem:[%s0 + $0x18] sm:$0xf]
    %v76 = vld [vmem:[%s0 + $0x1c] sm:$0xf]
    %v77 = vld [vmem:[%s0 + $0x20] sm:$0xf]
    %v78 = vld [vmem:[%s0 + $0x24] sm:$0xf]
    %v79 = vld [vmem:[%s0 + $0x28] sm:$0xf]
    %v80 = vld [vmem:[%s0 + $0x2c] sm:$0xf]
    %v81 = vld [vmem:[%s0 + $0x30] sm:$0xf]
    %v82 = vld [vmem:[%s0 + $0x34] sm:$0xf]
    %v83 = vld [vmem:[%s0 + $0x38] sm:$0xf]
    %v84 = vld [vmem:[%s0 + $0x3c] sm:$0xf]
    %v85 = vunpack.c.l.bf16 %v69
    %v86 = vunpack.c.l.bf16 %v70
    %v87 = vunpack.c.l.bf16 %v71
    %v88 = vunpack.c.l.bf16 %v72
    %v89 = vunpack.c.l.bf16 %v73
    %v90 = vunpack.c.l.bf16 %v74
    %v91 = vunpack.c.l.bf16 %v75
    %v92 = vunpack.c.l.bf16 %v76
    %v93 = vunpack.c.l.bf16 %v77
    %v94 = vunpack.c.l.bf16 %v78
    %v95 = vunpack.c.l.bf16 %v79
    %v96 = vunpack.c.l.bf16 %v80
    %v97 = vunpack.c.l.bf16 %v81
    %v98 = vunpack.c.l.bf16 %v82
    %v99 = vunpack.c.l.bf16 %v83
    %v100 = vunpack.c.l.bf16 %v84
    %102 = vset.pattern.permute.xlu0 3
    %103 = vperm.xlu0 %102, %v19
    %v104 = vpop.permute.xlu0 %103
    %107 = vset.pattern.permute.xlu0 3
    %108 = vperm.xlu0 %107, %v20
    %v109 = vpop.permute.xlu0 %108
    %112 = vset.pattern.permute.xlu0 3
    %113 = vperm.xlu0 %112, %v21
    %v114 = vpop.permute.xlu0 %113
    %117 = vset.pattern.permute.xlu0 3
    %118 = vperm.xlu0 %117, %v22
    %v119 = vpop.permute.xlu0 %118
    %122 = vset.pattern.permute.xlu0 3
    %123 = vperm.xlu0 %122, %v23
    %v124 = vpop.permute.xlu0 %123
    %127 = vset.pattern.permute.xlu0 3
    %128 = vperm.xlu0 %127, %v24
    %v129 = vpop.permute.xlu0 %128
    %132 = vset.pattern.permute.xlu0 3
    %133 = vperm.xlu0 %132, %v25
    %v134 = vpop.permute.xlu0 %133
    %137 = vset.pattern.permute.xlu0 3
    %138 = vperm.xlu0 %137, %v26
    %v139 = vpop.permute.xlu0 %138
    %142 = vset.pattern.permute.xlu0 3
    %143 = vperm.xlu0 %142, %v27
    %v144 = vpop.permute.xlu0 %143
    %147 = vset.pattern.permute.xlu0 3
    %148 = vperm.xlu0 %147, %v28
    %v149 = vpop.permute.xlu0 %148
    %152 = vset.pattern.permute.xlu0 3
    %153 = vperm.xlu0 %152, %v29
    %v154 = vpop.permute.xlu0 %153
    %157 = vset.pattern.permute.xlu0 3
    %158 = vperm.xlu0 %157, %v30
    %v159 = vpop.permute.xlu0 %158
    %162 = vset.pattern.permute.xlu0 3
    %163 = vperm.xlu0 %162, %v31
    %v164 = vpop.permute.xlu0 %163
    %167 = vset.pattern.permute.xlu0 3
    %168 = vperm.xlu0 %167, %v32
    %v169 = vpop.permute.xlu0 %168
    %172 = vset.pattern.permute.xlu0 3
    %173 = vperm.xlu0 %172, %v33
    %v174 = vpop.permute.xlu0 %173
    %177 = vset.pattern.permute.xlu0 3
    %178 = vperm.xlu0 %177, %v34
    %v179 = vpop.permute.xlu0 %178
    %v181 = vmul.f32 %v85, %v104
    %v182 = vmul.f32 %v86, %v109
    %v183 = vmul.f32 %v87, %v114
    %v184 = vmul.f32 %v88, %v119
    %v185 = vmul.f32 %v89, %v124
    %v186 = vmul.f32 %v90, %v129
    %v187 = vmul.f32 %v91, %v134
    %v188 = vmul.f32 %v92, %v139
    %v189 = vmul.f32 %v93, %v144
    %v190 = vmul.f32 %v94, %v149
    %v191 = vmul.f32 %v95, %v154
    %v192 = vmul.f32 %v96, %v159
    %v193 = vmul.f32 %v97, %v164
    %v194 = vmul.f32 %v98, %v169
    %v195 = vmul.f32 %v99, %v174
    %v196 = vmul.f32 %v100, %v179
    %197 = vrot.lane.b32.xlu0 %v85, 3
    %v198 = vpop.permute.xlu0 %197
    %199 = vrot.lane.b32.xlu0 %v86, 3
    %v200 = vpop.permute.xlu0 %199
    %201 = vrot.lane.b32.xlu0 %v87, 3
    %v202 = vpop.permute.xlu0 %201
    %203 = vrot.lane.b32.xlu0 %v88, 3
    %v204 = vpop.permute.xlu0 %203
    %205 = vrot.lane.b32.xlu0 %v89, 3
    %v206 = vpop.permute.xlu0 %205
    %207 = vrot.lane.b32.xlu0 %v90, 3
    %v208 = vpop.permute.xlu0 %207
    %209 = vrot.lane.b32.xlu0 %v91, 3
    %v210 = vpop.permute.xlu0 %209
    %211 = vrot.lane.b32.xlu0 %v92, 3
    %v212 = vpop.permute.xlu0 %211
    %213 = vrot.lane.b32.xlu0 %v93, 3
    %v214 = vpop.permute.xlu0 %213
    %215 = vrot.lane.b32.xlu0 %v94, 3
    %v216 = vpop.permute.xlu0 %215
    %217 = vrot.lane.b32.xlu0 %v95, 3
    %v218 = vpop.permute.xlu0 %217
    %219 = vrot.lane.b32.xlu0 %v96, 3
    %v220 = vpop.permute.xlu0 %219
    %221 = vrot.lane.b32.xlu0 %v97, 3
    %v222 = vpop.permute.xlu0 %221
    %223 = vrot.lane.b32.xlu0 %v98, 3
    %v224 = vpop.permute.xlu0 %223
    %225 = vrot.lane.b32.xlu0 %v99, 3
    %v226 = vpop.permute.xlu0 %225
    %227 = vrot.lane.b32.xlu0 %v100, 3
    %v228 = vpop.permute.xlu0 %227
    %vm229 = vcmp.ge.s32.totalorder %v68, 3
    %v230 = vsel %vm229, 1, 0
    %vm231 = vcmp.eq.s32.totalorder %v230, 1
    %v232 = vsel %vm231, %v198, 0.0
    %v233 = vsel %vm231, %v200, 0.0
    %v234 = vsel %vm231, %v202, 0.0
    %v235 = vsel %vm231, %v204, 0.0
    %v236 = vsel %vm231, %v206, 0.0
    %v237 = vsel %vm231, %v208, 0.0
    %v238 = vsel %vm231, %v210, 0.0
    %v239 = vsel %vm231, %v212, 0.0
    %v240 = vsel %vm231, %v214, 0.0
    %v241 = vsel %vm231, %v216, 0.0
    %v242 = vsel %vm231, %v218, 0.0
    %v243 = vsel %vm231, %v220, 0.0
    %v244 = vsel %vm231, %v222, 0.0
    %v245 = vsel %vm231, %v224, 0.0
    %v246 = vsel %vm231, %v226, 0.0
    %v247 = vsel %vm231, %v228, 0.0
    %248 = vset.pattern.permute.xlu0 0
    %249 = vperm.xlu0 %248, %v19
    %v250 = vpop.permute.xlu0 %249
    %252 = vset.pattern.permute.xlu0 0
    %253 = vperm.xlu0 %252, %v20
    %v254 = vpop.permute.xlu0 %253
    %256 = vset.pattern.permute.xlu0 0
    %257 = vperm.xlu0 %256, %v21
    %v258 = vpop.permute.xlu0 %257
    %260 = vset.pattern.permute.xlu0 0
    %261 = vperm.xlu0 %260, %v22
    %v262 = vpop.permute.xlu0 %261
    %264 = vset.pattern.permute.xlu0 0
    %265 = vperm.xlu0 %264, %v23
    %v266 = vpop.permute.xlu0 %265
    %268 = vset.pattern.permute.xlu0 0
    %269 = vperm.xlu0 %268, %v24
    %v270 = vpop.permute.xlu0 %269
    %272 = vset.pattern.permute.xlu0 0
    %273 = vperm.xlu0 %272, %v25
    %v274 = vpop.permute.xlu0 %273
    %276 = vset.pattern.permute.xlu0 0
    %277 = vperm.xlu0 %276, %v26
    %v278 = vpop.permute.xlu0 %277
    %280 = vset.pattern.permute.xlu0 0
    %281 = vperm.xlu0 %280, %v27
    %v282 = vpop.permute.xlu0 %281
    %284 = vset.pattern.permute.xlu0 0
    %285 = vperm.xlu0 %284, %v28
    %v286 = vpop.permute.xlu0 %285
    %288 = vset.pattern.permute.xlu0 0
    %289 = vperm.xlu0 %288, %v29
    %v290 = vpop.permute.xlu0 %289
    %292 = vset.pattern.permute.xlu0 0
    %293 = vperm.xlu0 %292, %v30
    %v294 = vpop.permute.xlu0 %293
    %296 = vset.pattern.permute.xlu0 0
    %297 = vperm.xlu0 %296, %v31
    %v298 = vpop.permute.xlu0 %297
    %300 = vset.pattern.permute.xlu0 0
    %301 = vperm.xlu0 %300, %v32
    %v302 = vpop.permute.xlu0 %301
    %304 = vset.pattern.permute.xlu0 0
    %305 = vperm.xlu0 %304, %v33
    %v306 = vpop.permute.xlu0 %305
    %308 = vset.pattern.permute.xlu0 0
    %309 = vperm.xlu0 %308, %v34
    %v310 = vpop.permute.xlu0 %309
    %v312 = vmul.f32 %v232, %v250
    %v313 = vmul.f32 %v233, %v254
    %v314 = vmul.f32 %v234, %v258
    %v315 = vmul.f32 %v235, %v262
    %v316 = vmul.f32 %v236, %v266
    %v317 = vmul.f32 %v237, %v270
    %v318 = vmul.f32 %v238, %v274
    %v319 = vmul.f32 %v239, %v278
    %v320 = vmul.f32 %v240, %v282
    %v321 = vmul.f32 %v241, %v286
    %v322 = vmul.f32 %v242, %v290
    %v323 = vmul.f32 %v243, %v294
    %v324 = vmul.f32 %v244, %v298
    %v325 = vmul.f32 %v245, %v302
    %v326 = vmul.f32 %v246, %v306
    %v327 = vmul.f32 %v247, %v310
    %v328 = vadd.f32 %v181, %v312
    %v329 = vadd.f32 %v182, %v313
    %v330 = vadd.f32 %v183, %v314
    %v331 = vadd.f32 %v184, %v315
    %v332 = vadd.f32 %v185, %v316
    %v333 = vadd.f32 %v186, %v317
    %v334 = vadd.f32 %v187, %v318
    %v335 = vadd.f32 %v188, %v319
    %v336 = vadd.f32 %v189, %v320
    %v337 = vadd.f32 %v190, %v321
    %v338 = vadd.f32 %v191, %v322
    %v339 = vadd.f32 %v192, %v323
    %v340 = vadd.f32 %v193, %v324
    %v341 = vadd.f32 %v194, %v325
    %v342 = vadd.f32 %v195, %v326
    %v343 = vadd.f32 %v196, %v327
    %344 = vrot.lane.b32.xlu0 %v85, 2
    %v345 = vpop.permute.xlu0 %344
    %346 = vrot.lane.b32.xlu0 %v86, 2
    %v347 = vpop.permute.xlu0 %346
    %348 = vrot.lane.b32.xlu0 %v87, 2
    %v349 = vpop.permute.xlu0 %348
    %350 = vrot.lane.b32.xlu0 %v88, 2
    %v351 = vpop.permute.xlu0 %350
    %352 = vrot.lane.b32.xlu0 %v89, 2
    %v353 = vpop.permute.xlu0 %352
    %354 = vrot.lane.b32.xlu0 %v90, 2
    %v355 = vpop.permute.xlu0 %354
    %356 = vrot.lane.b32.xlu0 %v91, 2
    %v357 = vpop.permute.xlu0 %356
    %358 = vrot.lane.b32.xlu0 %v92, 2
    %v359 = vpop.permute.xlu0 %358
    %360 = vrot.lane.b32.xlu0 %v93, 2
    %v361 = vpop.permute.xlu0 %360
    %362 = vrot.lane.b32.xlu0 %v94, 2
    %v363 = vpop.permute.xlu0 %362
    %364 = vrot.lane.b32.xlu0 %v95, 2
    %v365 = vpop.permute.xlu0 %364
    %366 = vrot.lane.b32.xlu0 %v96, 2
    %v367 = vpop.permute.xlu0 %366
    %368 = vrot.lane.b32.xlu0 %v97, 2
    %v369 = vpop.permute.xlu0 %368
    %370 = vrot.lane.b32.xlu0 %v98, 2
    %v371 = vpop.permute.xlu0 %370
    %372 = vrot.lane.b32.xlu0 %v99, 2
    %v373 = vpop.permute.xlu0 %372
    %374 = vrot.lane.b32.xlu0 %v100, 2
    %v375 = vpop.permute.xlu0 %374
    %vm376 = vcmp.ge.s32.totalorder %v68, 2
    %v377 = vsel %vm376, 1, 0
    %vm378 = vcmp.eq.s32.totalorder %v377, 1
    %v379 = vsel %vm378, %v345, 0.0
    %v380 = vsel %vm378, %v347, 0.0
    %v381 = vsel %vm378, %v349, 0.0
    %v382 = vsel %vm378, %v351, 0.0
    %v383 = vsel %vm378, %v353, 0.0
    %v384 = vsel %vm378, %v355, 0.0
    %v385 = vsel %vm378, %v357, 0.0
    %v386 = vsel %vm378, %v359, 0.0
    %v387 = vsel %vm378, %v361, 0.0
    %v388 = vsel %vm378, %v363, 0.0
    %v389 = vsel %vm378, %v365, 0.0
    %v390 = vsel %vm378, %v367, 0.0
    %v391 = vsel %vm378, %v369, 0.0
    %v392 = vsel %vm378, %v371, 0.0
    %v393 = vsel %vm378, %v373, 0.0
    %v394 = vsel %vm378, %v375, 0.0
    %395 = vset.pattern.permute.xlu0 1
    %396 = vperm.xlu0 %395, %v19
    %v397 = vpop.permute.xlu0 %396
    %399 = vset.pattern.permute.xlu0 1
    %400 = vperm.xlu0 %399, %v20
    %v401 = vpop.permute.xlu0 %400
    %403 = vset.pattern.permute.xlu0 1
    %404 = vperm.xlu0 %403, %v21
    %v405 = vpop.permute.xlu0 %404
    %407 = vset.pattern.permute.xlu0 1
    %408 = vperm.xlu0 %407, %v22
    %v409 = vpop.permute.xlu0 %408
    %411 = vset.pattern.permute.xlu0 1
    %412 = vperm.xlu0 %411, %v23
    %v413 = vpop.permute.xlu0 %412
    %415 = vset.pattern.permute.xlu0 1
    %416 = vperm.xlu0 %415, %v24
    %v417 = vpop.permute.xlu0 %416
    %419 = vset.pattern.permute.xlu0 1
    %420 = vperm.xlu0 %419, %v25
    %v421 = vpop.permute.xlu0 %420
    %423 = vset.pattern.permute.xlu0 1
    %424 = vperm.xlu0 %423, %v26
    %v425 = vpop.permute.xlu0 %424
    %427 = vset.pattern.permute.xlu0 1
    %428 = vperm.xlu0 %427, %v27
    %v429 = vpop.permute.xlu0 %428
    %431 = vset.pattern.permute.xlu0 1
    %432 = vperm.xlu0 %431, %v28
    %v433 = vpop.permute.xlu0 %432
    %435 = vset.pattern.permute.xlu0 1
    %436 = vperm.xlu0 %435, %v29
    %v437 = vpop.permute.xlu0 %436
    %439 = vset.pattern.permute.xlu0 1
    %440 = vperm.xlu0 %439, %v30
    %v441 = vpop.permute.xlu0 %440
    %443 = vset.pattern.permute.xlu0 1
    %444 = vperm.xlu0 %443, %v31
    %v445 = vpop.permute.xlu0 %444
    %447 = vset.pattern.permute.xlu0 1
    %448 = vperm.xlu0 %447, %v32
    %v449 = vpop.permute.xlu0 %448
    %451 = vset.pattern.permute.xlu0 1
    %452 = vperm.xlu0 %451, %v33
    %v453 = vpop.permute.xlu0 %452
    %455 = vset.pattern.permute.xlu0 1
    %456 = vperm.xlu0 %455, %v34
    %v457 = vpop.permute.xlu0 %456
    %v459 = vmul.f32 %v379, %v397
    %v460 = vmul.f32 %v380, %v401
    %v461 = vmul.f32 %v381, %v405
    %v462 = vmul.f32 %v382, %v409
    %v463 = vmul.f32 %v383, %v413
    %v464 = vmul.f32 %v384, %v417
    %v465 = vmul.f32 %v385, %v421
    %v466 = vmul.f32 %v386, %v425
    %v467 = vmul.f32 %v387, %v429
    %v468 = vmul.f32 %v388, %v433
    %v469 = vmul.f32 %v389, %v437
    %v470 = vmul.f32 %v390, %v441
    %v471 = vmul.f32 %v391, %v445
    %v472 = vmul.f32 %v392, %v449
    %v473 = vmul.f32 %v393, %v453
    %v474 = vmul.f32 %v394, %v457
    %v475 = vadd.f32 %v328, %v459
    %v476 = vadd.f32 %v329, %v460
    %v477 = vadd.f32 %v330, %v461
    %v478 = vadd.f32 %v331, %v462
    %v479 = vadd.f32 %v332, %v463
    %v480 = vadd.f32 %v333, %v464
    %v481 = vadd.f32 %v334, %v465
    %v482 = vadd.f32 %v335, %v466
    %v483 = vadd.f32 %v336, %v467
    %v484 = vadd.f32 %v337, %v468
    %v485 = vadd.f32 %v338, %v469
    %v486 = vadd.f32 %v339, %v470
    %v487 = vadd.f32 %v340, %v471
    %v488 = vadd.f32 %v341, %v472
    %v489 = vadd.f32 %v342, %v473
    %v490 = vadd.f32 %v343, %v474
    %491 = vrot.lane.b32.xlu0 %v85, 1
    %v492 = vpop.permute.xlu0 %491
    %493 = vrot.lane.b32.xlu0 %v86, 1
    %v494 = vpop.permute.xlu0 %493
    %495 = vrot.lane.b32.xlu0 %v87, 1
    %v496 = vpop.permute.xlu0 %495
    %497 = vrot.lane.b32.xlu0 %v88, 1
    %v498 = vpop.permute.xlu0 %497
    %499 = vrot.lane.b32.xlu0 %v89, 1
    %v500 = vpop.permute.xlu0 %499
    %501 = vrot.lane.b32.xlu0 %v90, 1
    %v502 = vpop.permute.xlu0 %501
    %503 = vrot.lane.b32.xlu0 %v91, 1
    %v504 = vpop.permute.xlu0 %503
    %505 = vrot.lane.b32.xlu0 %v92, 1
    %v506 = vpop.permute.xlu0 %505
    %507 = vrot.lane.b32.xlu0 %v93, 1
    %v508 = vpop.permute.xlu0 %507
    %509 = vrot.lane.b32.xlu0 %v94, 1
    %v510 = vpop.permute.xlu0 %509
    %511 = vrot.lane.b32.xlu0 %v95, 1
    %v512 = vpop.permute.xlu0 %511
    %513 = vrot.lane.b32.xlu0 %v96, 1
    %v514 = vpop.permute.xlu0 %513
    %515 = vrot.lane.b32.xlu0 %v97, 1
    %v516 = vpop.permute.xlu0 %515
    %517 = vrot.lane.b32.xlu0 %v98, 1
    %v518 = vpop.permute.xlu0 %517
    %519 = vrot.lane.b32.xlu0 %v99, 1
    %v520 = vpop.permute.xlu0 %519
    %521 = vrot.lane.b32.xlu0 %v100, 1
    %v522 = vpop.permute.xlu0 %521
    %vm523 = vcmp.ge.s32.totalorder %v68, 1
    %v524 = vsel %vm523, 1, 0
    %vm525 = vcmp.eq.s32.totalorder %v524, 1
    %v526 = vsel %vm525, %v492, 0.0
    %v527 = vsel %vm525, %v494, 0.0
    %v528 = vsel %vm525, %v496, 0.0
    %v529 = vsel %vm525, %v498, 0.0
    %v530 = vsel %vm525, %v500, 0.0
    %v531 = vsel %vm525, %v502, 0.0
    %v532 = vsel %vm525, %v504, 0.0
    %v533 = vsel %vm525, %v506, 0.0
    %v534 = vsel %vm525, %v508, 0.0
    %v535 = vsel %vm525, %v510, 0.0
    %v536 = vsel %vm525, %v512, 0.0
    %v537 = vsel %vm525, %v514, 0.0
    %v538 = vsel %vm525, %v516, 0.0
    %v539 = vsel %vm525, %v518, 0.0
    %v540 = vsel %vm525, %v520, 0.0
    %v541 = vsel %vm525, %v522, 0.0
    %542 = vset.pattern.permute.xlu0 2
    %543 = vperm.xlu0 %542, %v19
    %v544 = vpop.permute.xlu0 %543
    %546 = vset.pattern.permute.xlu0 2
    %547 = vperm.xlu0 %546, %v20
    %v548 = vpop.permute.xlu0 %547
    %550 = vset.pattern.permute.xlu0 2
    %551 = vperm.xlu0 %550, %v21
    %v552 = vpop.permute.xlu0 %551
    %554 = vset.pattern.permute.xlu0 2
    %555 = vperm.xlu0 %554, %v22
    %v556 = vpop.permute.xlu0 %555
    %558 = vset.pattern.permute.xlu0 2
    %559 = vperm.xlu0 %558, %v23
    %v560 = vpop.permute.xlu0 %559
    %562 = vset.pattern.permute.xlu0 2
    %563 = vperm.xlu0 %562, %v24
    %v564 = vpop.permute.xlu0 %563
    %566 = vset.pattern.permute.xlu0 2
    %567 = vperm.xlu0 %566, %v25
    %v568 = vpop.permute.xlu0 %567
    %570 = vset.pattern.permute.xlu0 2
    %571 = vperm.xlu0 %570, %v26
    %v572 = vpop.permute.xlu0 %571
    %574 = vset.pattern.permute.xlu0 2
    %575 = vperm.xlu0 %574, %v27
    %v576 = vpop.permute.xlu0 %575
    %578 = vset.pattern.permute.xlu0 2
    %579 = vperm.xlu0 %578, %v28
    %v580 = vpop.permute.xlu0 %579
    %582 = vset.pattern.permute.xlu0 2
    %583 = vperm.xlu0 %582, %v29
    %v584 = vpop.permute.xlu0 %583
    %586 = vset.pattern.permute.xlu0 2
    %587 = vperm.xlu0 %586, %v30
    %v588 = vpop.permute.xlu0 %587
    %590 = vset.pattern.permute.xlu0 2
    %591 = vperm.xlu0 %590, %v31
    %v592 = vpop.permute.xlu0 %591
    %594 = vset.pattern.permute.xlu0 2
    %595 = vperm.xlu0 %594, %v32
    %v596 = vpop.permute.xlu0 %595
    %598 = vset.pattern.permute.xlu0 2
    %599 = vperm.xlu0 %598, %v33
    %v600 = vpop.permute.xlu0 %599
    %602 = vset.pattern.permute.xlu0 2
    %603 = vperm.xlu0 %602, %v34
    %v604 = vpop.permute.xlu0 %603
    %v606 = vmul.f32 %v526, %v544
    %v607 = vmul.f32 %v527, %v548
    %v608 = vmul.f32 %v528, %v552
    %v609 = vmul.f32 %v529, %v556
    %v610 = vmul.f32 %v530, %v560
    %v611 = vmul.f32 %v531, %v564
    %v612 = vmul.f32 %v532, %v568
    %v613 = vmul.f32 %v533, %v572
    %v614 = vmul.f32 %v534, %v576
    %v615 = vmul.f32 %v535, %v580
    %v616 = vmul.f32 %v536, %v584
    %v617 = vmul.f32 %v537, %v588
    %v618 = vmul.f32 %v538, %v592
    %v619 = vmul.f32 %v539, %v596
    %v620 = vmul.f32 %v540, %v600
    %v621 = vmul.f32 %v541, %v604
    %v622 = vadd.f32 %v475, %v606
    %v623 = vadd.f32 %v476, %v607
    %v624 = vadd.f32 %v477, %v608
    %v625 = vadd.f32 %v478, %v609
    %v626 = vadd.f32 %v479, %v610
    %v627 = vadd.f32 %v480, %v611
    %v628 = vadd.f32 %v481, %v612
    %v629 = vadd.f32 %v482, %v613
    %v630 = vadd.f32 %v483, %v614
    %v631 = vadd.f32 %v484, %v615
    %v632 = vadd.f32 %v485, %v616
    %v633 = vadd.f32 %v486, %v617
    %v634 = vadd.f32 %v487, %v618
    %v635 = vadd.f32 %v488, %v619
    %v636 = vadd.f32 %v489, %v620
    %v637 = vadd.f32 %v490, %v621
    %638 = vrot.lane.b32.xlu0 %v85, 127
    %v639 = vpop.permute.xlu0 %638
    %640 = vrot.lane.b32.xlu0 %v86, 127
    %v641 = vpop.permute.xlu0 %640
    %642 = vrot.lane.b32.xlu0 %v87, 127
    %v643 = vpop.permute.xlu0 %642
    %644 = vrot.lane.b32.xlu0 %v88, 127
    %v645 = vpop.permute.xlu0 %644
    %646 = vrot.lane.b32.xlu0 %v89, 127
    %v647 = vpop.permute.xlu0 %646
    %648 = vrot.lane.b32.xlu0 %v90, 127
    %v649 = vpop.permute.xlu0 %648
    %650 = vrot.lane.b32.xlu0 %v91, 127
    %v651 = vpop.permute.xlu0 %650
    %652 = vrot.lane.b32.xlu0 %v92, 127
    %v653 = vpop.permute.xlu0 %652
    %654 = vrot.lane.b32.xlu0 %v93, 127
    %v655 = vpop.permute.xlu0 %654
    %656 = vrot.lane.b32.xlu0 %v94, 127
    %v657 = vpop.permute.xlu0 %656
    %658 = vrot.lane.b32.xlu0 %v95, 127
    %v659 = vpop.permute.xlu0 %658
    %660 = vrot.lane.b32.xlu0 %v96, 127
    %v661 = vpop.permute.xlu0 %660
    %662 = vrot.lane.b32.xlu0 %v97, 127
    %v663 = vpop.permute.xlu0 %662
    %664 = vrot.lane.b32.xlu0 %v98, 127
    %v665 = vpop.permute.xlu0 %664
    %666 = vrot.lane.b32.xlu0 %v99, 127
    %v667 = vpop.permute.xlu0 %666
    %668 = vrot.lane.b32.xlu0 %v100, 127
    %v669 = vpop.permute.xlu0 %668
    %vm670 = vcmp.lt.s32.totalorder %v68, 127
    %v671 = vsel %vm670, 1, 0
    %vm672 = vcmp.eq.s32.totalorder %v671, 1
    %v673 = vsel %vm672, %v639, 0.0
    %v674 = vsel %vm672, %v641, 0.0
    %v675 = vsel %vm672, %v643, 0.0
    %v676 = vsel %vm672, %v645, 0.0
    %v677 = vsel %vm672, %v647, 0.0
    %v678 = vsel %vm672, %v649, 0.0
    %v679 = vsel %vm672, %v651, 0.0
    %v680 = vsel %vm672, %v653, 0.0
    %v681 = vsel %vm672, %v655, 0.0
    %v682 = vsel %vm672, %v657, 0.0
    %v683 = vsel %vm672, %v659, 0.0
    %v684 = vsel %vm672, %v661, 0.0
    %v685 = vsel %vm672, %v663, 0.0
    %v686 = vsel %vm672, %v665, 0.0
    %v687 = vsel %vm672, %v667, 0.0
    %v688 = vsel %vm672, %v669, 0.0
    %689 = vset.pattern.permute.xlu0 4
    %690 = vperm.xlu0 %689, %v19
    %v691 = vpop.permute.xlu0 %690
    %693 = vset.pattern.permute.xlu0 4
    %694 = vperm.xlu0 %693, %v20
    %v695 = vpop.permute.xlu0 %694
    %697 = vset.pattern.permute.xlu0 4
    %698 = vperm.xlu0 %697, %v21
    %v699 = vpop.permute.xlu0 %698
    %701 = vset.pattern.permute.xlu0 4
    %702 = vperm.xlu0 %701, %v22
    %v703 = vpop.permute.xlu0 %702
    %705 = vset.pattern.permute.xlu0 4
    %706 = vperm.xlu0 %705, %v23
    %v707 = vpop.permute.xlu0 %706
    %709 = vset.pattern.permute.xlu0 4
    %710 = vperm.xlu0 %709, %v24
    %v711 = vpop.permute.xlu0 %710
    %713 = vset.pattern.permute.xlu0 4
    %714 = vperm.xlu0 %713, %v25
    %v715 = vpop.permute.xlu0 %714
    %717 = vset.pattern.permute.xlu0 4
    %718 = vperm.xlu0 %717, %v26
    %v719 = vpop.permute.xlu0 %718
    %721 = vset.pattern.permute.xlu0 4
    %722 = vperm.xlu0 %721, %v27
    %v723 = vpop.permute.xlu0 %722
    %725 = vset.pattern.permute.xlu0 4
    %726 = vperm.xlu0 %725, %v28
    %v727 = vpop.permute.xlu0 %726
    %729 = vset.pattern.permute.xlu0 4
    %730 = vperm.xlu0 %729, %v29
    %v731 = vpop.permute.xlu0 %730
    %733 = vset.pattern.permute.xlu0 4
    %734 = vperm.xlu0 %733, %v30
    %v735 = vpop.permute.xlu0 %734
    %737 = vset.pattern.permute.xlu0 4
    %738 = vperm.xlu0 %737, %v31
    %v739 = vpop.permute.xlu0 %738
    %741 = vset.pattern.permute.xlu0 4
    %742 = vperm.xlu0 %741, %v32
    %v743 = vpop.permute.xlu0 %742
    %745 = vset.pattern.permute.xlu0 4
    %746 = vperm.xlu0 %745, %v33
    %v747 = vpop.permute.xlu0 %746
    %749 = vset.pattern.permute.xlu0 4
    %750 = vperm.xlu0 %749, %v34
    %v751 = vpop.permute.xlu0 %750
    %v753 = vmul.f32 %v673, %v691
    %v754 = vmul.f32 %v674, %v695
    %v755 = vmul.f32 %v675, %v699
    %v756 = vmul.f32 %v676, %v703
    %v757 = vmul.f32 %v677, %v707
    %v758 = vmul.f32 %v678, %v711
    %v759 = vmul.f32 %v679, %v715
    %v760 = vmul.f32 %v680, %v719
    %v761 = vmul.f32 %v681, %v723
    %v762 = vmul.f32 %v682, %v727
    %v763 = vmul.f32 %v683, %v731
    %v764 = vmul.f32 %v684, %v735
    %v765 = vmul.f32 %v685, %v739
    %v766 = vmul.f32 %v686, %v743
    %v767 = vmul.f32 %v687, %v747
    %v768 = vmul.f32 %v688, %v751
    %v769 = vadd.f32 %v622, %v753
    %v770 = vadd.f32 %v623, %v754
    %v771 = vadd.f32 %v624, %v755
    %v772 = vadd.f32 %v625, %v756
    %v773 = vadd.f32 %v626, %v757
    %v774 = vadd.f32 %v627, %v758
    %v775 = vadd.f32 %v628, %v759
    %v776 = vadd.f32 %v629, %v760
    %v777 = vadd.f32 %v630, %v761
    %v778 = vadd.f32 %v631, %v762
    %v779 = vadd.f32 %v632, %v763
    %v780 = vadd.f32 %v633, %v764
    %v781 = vadd.f32 %v634, %v765
    %v782 = vadd.f32 %v635, %v766
    %v783 = vadd.f32 %v636, %v767
    %v784 = vadd.f32 %v637, %v768
    %785 = vrot.lane.b32.xlu0 %v85, 126
    %v786 = vpop.permute.xlu0 %785
    %787 = vrot.lane.b32.xlu0 %v86, 126
    %v788 = vpop.permute.xlu0 %787
    %789 = vrot.lane.b32.xlu0 %v87, 126
    %v790 = vpop.permute.xlu0 %789
    %791 = vrot.lane.b32.xlu0 %v88, 126
    %v792 = vpop.permute.xlu0 %791
    %793 = vrot.lane.b32.xlu0 %v89, 126
    %v794 = vpop.permute.xlu0 %793
    %795 = vrot.lane.b32.xlu0 %v90, 126
    %v796 = vpop.permute.xlu0 %795
    %797 = vrot.lane.b32.xlu0 %v91, 126
    %v798 = vpop.permute.xlu0 %797
    %799 = vrot.lane.b32.xlu0 %v92, 126
    %v800 = vpop.permute.xlu0 %799
    %801 = vrot.lane.b32.xlu0 %v93, 126
    %v802 = vpop.permute.xlu0 %801
    %803 = vrot.lane.b32.xlu0 %v94, 126
    %v804 = vpop.permute.xlu0 %803
    %805 = vrot.lane.b32.xlu0 %v95, 126
    %v806 = vpop.permute.xlu0 %805
    %807 = vrot.lane.b32.xlu0 %v96, 126
    %v808 = vpop.permute.xlu0 %807
    %809 = vrot.lane.b32.xlu0 %v97, 126
    %v810 = vpop.permute.xlu0 %809
    %811 = vrot.lane.b32.xlu0 %v98, 126
    %v812 = vpop.permute.xlu0 %811
    %813 = vrot.lane.b32.xlu0 %v99, 126
    %v814 = vpop.permute.xlu0 %813
    %815 = vrot.lane.b32.xlu0 %v100, 126
    %v816 = vpop.permute.xlu0 %815
    %vm817 = vcmp.lt.s32.totalorder %v68, 126
    %v818 = vsel %vm817, 1, 0
    %vm819 = vcmp.eq.s32.totalorder %v818, 1
    %v820 = vsel %vm819, %v786, 0.0
    %v821 = vsel %vm819, %v788, 0.0
    %v822 = vsel %vm819, %v790, 0.0
    %v823 = vsel %vm819, %v792, 0.0
    %v824 = vsel %vm819, %v794, 0.0
    %v825 = vsel %vm819, %v796, 0.0
    %v826 = vsel %vm819, %v798, 0.0
    %v827 = vsel %vm819, %v800, 0.0
    %v828 = vsel %vm819, %v802, 0.0
    %v829 = vsel %vm819, %v804, 0.0
    %v830 = vsel %vm819, %v806, 0.0
    %v831 = vsel %vm819, %v808, 0.0
    %v832 = vsel %vm819, %v810, 0.0
    %v833 = vsel %vm819, %v812, 0.0
    %v834 = vsel %vm819, %v814, 0.0
    %v835 = vsel %vm819, %v816, 0.0
    %836 = vset.pattern.permute.xlu0 5
    %837 = vperm.xlu0 %836, %v19
    %v838 = vpop.permute.xlu0 %837
    %840 = vset.pattern.permute.xlu0 5
    %841 = vperm.xlu0 %840, %v20
    %v842 = vpop.permute.xlu0 %841
    %844 = vset.pattern.permute.xlu0 5
    %845 = vperm.xlu0 %844, %v21
    %v846 = vpop.permute.xlu0 %845
    %848 = vset.pattern.permute.xlu0 5
    %849 = vperm.xlu0 %848, %v22
    %v850 = vpop.permute.xlu0 %849
    %852 = vset.pattern.permute.xlu0 5
    %853 = vperm.xlu0 %852, %v23
    %v854 = vpop.permute.xlu0 %853
    %856 = vset.pattern.permute.xlu0 5
    %857 = vperm.xlu0 %856, %v24
    %v858 = vpop.permute.xlu0 %857
    %860 = vset.pattern.permute.xlu0 5
    %861 = vperm.xlu0 %860, %v25
    %v862 = vpop.permute.xlu0 %861
    %864 = vset.pattern.permute.xlu0 5
    %865 = vperm.xlu0 %864, %v26
    %v866 = vpop.permute.xlu0 %865
    %868 = vset.pattern.permute.xlu0 5
    %869 = vperm.xlu0 %868, %v27
    %v870 = vpop.permute.xlu0 %869
    %872 = vset.pattern.permute.xlu0 5
    %873 = vperm.xlu0 %872, %v28
    %v874 = vpop.permute.xlu0 %873
    %876 = vset.pattern.permute.xlu0 5
    %877 = vperm.xlu0 %876, %v29
    %v878 = vpop.permute.xlu0 %877
    %880 = vset.pattern.permute.xlu0 5
    %881 = vperm.xlu0 %880, %v30
    %v882 = vpop.permute.xlu0 %881
    %884 = vset.pattern.permute.xlu0 5
    %885 = vperm.xlu0 %884, %v31
    %v886 = vpop.permute.xlu0 %885
    %888 = vset.pattern.permute.xlu0 5
    %889 = vperm.xlu0 %888, %v32
    %v890 = vpop.permute.xlu0 %889
    %892 = vset.pattern.permute.xlu0 5
    %893 = vperm.xlu0 %892, %v33
    %v894 = vpop.permute.xlu0 %893
    %896 = vset.pattern.permute.xlu0 5
    %897 = vperm.xlu0 %896, %v34
    %v898 = vpop.permute.xlu0 %897
    %v900 = vmul.f32 %v820, %v838
    %v901 = vmul.f32 %v821, %v842
    %v902 = vmul.f32 %v822, %v846
    %v903 = vmul.f32 %v823, %v850
    %v904 = vmul.f32 %v824, %v854
    %v905 = vmul.f32 %v825, %v858
    %v906 = vmul.f32 %v826, %v862
    %v907 = vmul.f32 %v827, %v866
    %v908 = vmul.f32 %v828, %v870
    %v909 = vmul.f32 %v829, %v874
    %v910 = vmul.f32 %v830, %v878
    %v911 = vmul.f32 %v831, %v882
    %v912 = vmul.f32 %v832, %v886
    %v913 = vmul.f32 %v833, %v890
    %v914 = vmul.f32 %v834, %v894
    %v915 = vmul.f32 %v835, %v898
    %v916 = vadd.f32 %v769, %v900
    %v917 = vadd.f32 %v770, %v901
    %v918 = vadd.f32 %v771, %v902
    %v919 = vadd.f32 %v772, %v903
    %v920 = vadd.f32 %v773, %v904
    %v921 = vadd.f32 %v774, %v905
    %v922 = vadd.f32 %v775, %v906
    %v923 = vadd.f32 %v776, %v907
    %v924 = vadd.f32 %v777, %v908
    %v925 = vadd.f32 %v778, %v909
    %v926 = vadd.f32 %v779, %v910
    %v927 = vadd.f32 %v780, %v911
    %v928 = vadd.f32 %v781, %v912
    %v929 = vadd.f32 %v782, %v913
    %v930 = vadd.f32 %v783, %v914
    %v931 = vadd.f32 %v784, %v915
    %932 = vrot.lane.b32.xlu0 %v85, 125
    %v933 = vpop.permute.xlu0 %932
    %934 = vrot.lane.b32.xlu0 %v86, 125
    %v935 = vpop.permute.xlu0 %934
    %936 = vrot.lane.b32.xlu0 %v87, 125
    %v937 = vpop.permute.xlu0 %936
    %938 = vrot.lane.b32.xlu0 %v88, 125
    %v939 = vpop.permute.xlu0 %938
    %940 = vrot.lane.b32.xlu0 %v89, 125
    %v941 = vpop.permute.xlu0 %940
    %942 = vrot.lane.b32.xlu0 %v90, 125
    %v943 = vpop.permute.xlu0 %942
    %944 = vrot.lane.b32.xlu0 %v91, 125
    %v945 = vpop.permute.xlu0 %944
    %946 = vrot.lane.b32.xlu0 %v92, 125
    %v947 = vpop.permute.xlu0 %946
    %948 = vrot.lane.b32.xlu0 %v93, 125
    %v949 = vpop.permute.xlu0 %948
    %950 = vrot.lane.b32.xlu0 %v94, 125
    %v951 = vpop.permute.xlu0 %950
    %952 = vrot.lane.b32.xlu0 %v95, 125
    %v953 = vpop.permute.xlu0 %952
    %954 = vrot.lane.b32.xlu0 %v96, 125
    %v955 = vpop.permute.xlu0 %954
    %956 = vrot.lane.b32.xlu0 %v97, 125
    %v957 = vpop.permute.xlu0 %956
    %958 = vrot.lane.b32.xlu0 %v98, 125
    %v959 = vpop.permute.xlu0 %958
    %960 = vrot.lane.b32.xlu0 %v99, 125
    %v961 = vpop.permute.xlu0 %960
    %962 = vrot.lane.b32.xlu0 %v100, 125
    %v963 = vpop.permute.xlu0 %962
    %vm964 = vcmp.lt.s32.totalorder %v68, 125
    %v965 = vsel %vm964, 1, 0
    %vm966 = vcmp.eq.s32.totalorder %v965, 1
    %v967 = vsel %vm966, %v933, 0.0
    %v968 = vsel %vm966, %v935, 0.0
    %v969 = vsel %vm966, %v937, 0.0
    %v970 = vsel %vm966, %v939, 0.0
    %v971 = vsel %vm966, %v941, 0.0
    %v972 = vsel %vm966, %v943, 0.0
    %v973 = vsel %vm966, %v945, 0.0
    %v974 = vsel %vm966, %v947, 0.0
    %v975 = vsel %vm966, %v949, 0.0
    %v976 = vsel %vm966, %v951, 0.0
    %v977 = vsel %vm966, %v953, 0.0
    %v978 = vsel %vm966, %v955, 0.0
    %v979 = vsel %vm966, %v957, 0.0
    %v980 = vsel %vm966, %v959, 0.0
    %v981 = vsel %vm966, %v961, 0.0
    %v982 = vsel %vm966, %v963, 0.0
    %983 = vset.pattern.permute.xlu0 6
    %984 = vperm.xlu0 %983, %v19
    %v985 = vpop.permute.xlu0 %984
    %987 = vset.pattern.permute.xlu0 6
    %988 = vperm.xlu0 %987, %v20
    %v989 = vpop.permute.xlu0 %988
    %991 = vset.pattern.permute.xlu0 6
    %992 = vperm.xlu0 %991, %v21
    %v993 = vpop.permute.xlu0 %992
    %995 = vset.pattern.permute.xlu0 6
    %996 = vperm.xlu0 %995, %v22
    %v997 = vpop.permute.xlu0 %996
    %999 = vset.pattern.permute.xlu0 6
    %1000 = vperm.xlu0 %999, %v23
    %v1001 = vpop.permute.xlu0 %1000
    %1003 = vset.pattern.permute.xlu0 6
    %1004 = vperm.xlu0 %1003, %v24
    %v1005 = vpop.permute.xlu0 %1004
    %1007 = vset.pattern.permute.xlu0 6
    %1008 = vperm.xlu0 %1007, %v25
    %v1009 = vpop.permute.xlu0 %1008
    %1011 = vset.pattern.permute.xlu0 6
    %1012 = vperm.xlu0 %1011, %v26
    %v1013 = vpop.permute.xlu0 %1012
    %1015 = vset.pattern.permute.xlu0 6
    %1016 = vperm.xlu0 %1015, %v27
    %v1017 = vpop.permute.xlu0 %1016
    %1019 = vset.pattern.permute.xlu0 6
    %1020 = vperm.xlu0 %1019, %v28
    %v1021 = vpop.permute.xlu0 %1020
    %1023 = vset.pattern.permute.xlu0 6
    %1024 = vperm.xlu0 %1023, %v29
    %v1025 = vpop.permute.xlu0 %1024
    %1027 = vset.pattern.permute.xlu0 6
    %1028 = vperm.xlu0 %1027, %v30
    %v1029 = vpop.permute.xlu0 %1028
    %1031 = vset.pattern.permute.xlu0 6
    %1032 = vperm.xlu0 %1031, %v31
    %v1033 = vpop.permute.xlu0 %1032
    %1035 = vset.pattern.permute.xlu0 6
    %1036 = vperm.xlu0 %1035, %v32
    %v1037 = vpop.permute.xlu0 %1036
    %1039 = vset.pattern.permute.xlu0 6
    %1040 = vperm.xlu0 %1039, %v33
    %v1041 = vpop.permute.xlu0 %1040
    %1043 = vset.pattern.permute.xlu0 6
    %1044 = vperm.xlu0 %1043, %v34
    %v1045 = vpop.permute.xlu0 %1044
    %v1047 = vmul.f32 %v967, %v985
    %v1048 = vmul.f32 %v968, %v989
    %v1049 = vmul.f32 %v969, %v993
    %v1050 = vmul.f32 %v970, %v997
    %v1051 = vmul.f32 %v971, %v1001
    %v1052 = vmul.f32 %v972, %v1005
    %v1053 = vmul.f32 %v973, %v1009
    %v1054 = vmul.f32 %v974, %v1013
    %v1055 = vmul.f32 %v975, %v1017
    %v1056 = vmul.f32 %v976, %v1021
    %v1057 = vmul.f32 %v977, %v1025
    %v1058 = vmul.f32 %v978, %v1029
    %v1059 = vmul.f32 %v979, %v1033
    %v1060 = vmul.f32 %v980, %v1037
    %v1061 = vmul.f32 %v981, %v1041
    %v1062 = vmul.f32 %v982, %v1045
    %v1063 = vadd.f32 %v916, %v1047
    %v1064 = vadd.f32 %v917, %v1048
    %v1065 = vadd.f32 %v918, %v1049
    %v1066 = vadd.f32 %v919, %v1050
    %v1067 = vadd.f32 %v920, %v1051
    %v1068 = vadd.f32 %v921, %v1052
    %v1069 = vadd.f32 %v922, %v1053
    %v1070 = vadd.f32 %v923, %v1054
    %v1071 = vadd.f32 %v924, %v1055
    %v1072 = vadd.f32 %v925, %v1056
    %v1073 = vadd.f32 %v926, %v1057
    %v1074 = vadd.f32 %v927, %v1058
    %v1075 = vadd.f32 %v928, %v1059
    %v1076 = vadd.f32 %v929, %v1060
    %v1077 = vadd.f32 %v930, %v1061
    %v1078 = vadd.f32 %v931, %v1062
    %v1079 = vpack.c.bf16 %v1064, %v1063
    %v1080 = vpack.c.bf16 %v1066, %v1065
    %v1081 = vpack.c.bf16 %v1068, %v1067
    %v1082 = vpack.c.bf16 %v1070, %v1069
    %v1083 = vpack.c.bf16 %v1072, %v1071
    %v1084 = vpack.c.bf16 %v1074, %v1073
    %v1085 = vpack.c.bf16 %v1076, %v1075
    %v1086 = vpack.c.bf16 %v1078, %v1077
    %1088 = vset.pattern.permute.xlu0 0
    %1089 = vperm.xlu0 %1088, %v51
    %v1090 = vpop.permute.xlu0 %1089
    %1093 = vset.pattern.permute.xlu0 0
    %1094 = vperm.xlu0 %1093, %v52
    %v1095 = vpop.permute.xlu0 %1094
    %1098 = vset.pattern.permute.xlu0 0
    %1099 = vperm.xlu0 %1098, %v53
    %v1100 = vpop.permute.xlu0 %1099
    %1103 = vset.pattern.permute.xlu0 0
    %1104 = vperm.xlu0 %1103, %v54
    %v1105 = vpop.permute.xlu0 %1104
    %1108 = vset.pattern.permute.xlu0 0
    %1109 = vperm.xlu0 %1108, %v55
    %v1110 = vpop.permute.xlu0 %1109
    %1113 = vset.pattern.permute.xlu0 0
    %1114 = vperm.xlu0 %1113, %v56
    %v1115 = vpop.permute.xlu0 %1114
    %1118 = vset.pattern.permute.xlu0 0
    %1119 = vperm.xlu0 %1118, %v57
    %v1120 = vpop.permute.xlu0 %1119
    %1123 = vset.pattern.permute.xlu0 0
    %1124 = vperm.xlu0 %1123, %v58
    %v1125 = vpop.permute.xlu0 %1124
    %1128 = vset.pattern.permute.xlu0 0
    %1129 = vperm.xlu0 %1128, %v59
    %v1130 = vpop.permute.xlu0 %1129
    %1133 = vset.pattern.permute.xlu0 0
    %1134 = vperm.xlu0 %1133, %v60
    %v1135 = vpop.permute.xlu0 %1134
    %1138 = vset.pattern.permute.xlu0 0
    %1139 = vperm.xlu0 %1138, %v61
    %v1140 = vpop.permute.xlu0 %1139
    %1143 = vset.pattern.permute.xlu0 0
    %1144 = vperm.xlu0 %1143, %v62
    %v1145 = vpop.permute.xlu0 %1144
    %1148 = vset.pattern.permute.xlu0 0
    %1149 = vperm.xlu0 %1148, %v63
    %v1150 = vpop.permute.xlu0 %1149
    %1153 = vset.pattern.permute.xlu0 0
    %1154 = vperm.xlu0 %1153, %v64
    %v1155 = vpop.permute.xlu0 %1154
    %1158 = vset.pattern.permute.xlu0 0
    %1159 = vperm.xlu0 %1158, %v65
    %v1160 = vpop.permute.xlu0 %1159
    %1163 = vset.pattern.permute.xlu0 0
    %1164 = vperm.xlu0 %1163, %v66
    %v1165 = vpop.permute.xlu0 %1164
    %v1183 = vunpack.c.l.b16 %v35
    %v1184 = vunpack.c.l.b16 %v36
    %v1185 = vunpack.c.l.b16 %v37
    %v1186 = vunpack.c.l.b16 %v38
    %v1187 = vunpack.c.l.b16 %v39
    %v1188 = vunpack.c.l.b16 %v40
    %v1189 = vunpack.c.l.b16 %v41
    %v1190 = vunpack.c.l.b16 %v42
    %v1191 = vunpack.c.l.b16 %v43
    %v1192 = vunpack.c.l.b16 %v44
    %v1193 = vunpack.c.l.b16 %v45
    %v1194 = vunpack.c.l.b16 %v46
    %v1195 = vunpack.c.l.b16 %v47
    %v1196 = vunpack.c.l.b16 %v48
    %v1197 = vunpack.c.l.b16 %v49
    %v1198 = vunpack.c.l.b16 %v50
    %v1199 = vpack.c.b16 %v1184, %v1183
    %v1200 = vpack.c.b16 %v1186, %v1185
    %v1201 = vpack.c.b16 %v1188, %v1187
    %v1202 = vpack.c.b16 %v1190, %v1189
    %v1203 = vpack.c.b16 %v1192, %v1191
    %v1204 = vpack.c.b16 %v1194, %v1193
    %v1205 = vpack.c.b16 %v1196, %v1195
    %v1206 = vpack.c.b16 %v1198, %v1197
    %1215 = vmatprep.subr.bf16.mxu0 0
    %1216 = vmatpush1.bf16.msra.mxu0 %v1086
    %1217 = vmatprep.subr.bf16.mxu0 0
    %1218 = vmatpush1.bf16.msra.mxu0 %v1085
    %1219 = vmatprep.subr.bf16.mxu0 0
    %1220 = vmatpush1.bf16.msra.mxu0 %v1084
    %1221 = vmatprep.subr.bf16.mxu0 0
    %1222 = vmatpush1.bf16.msra.mxu0 %v1083
    %1223 = vmatprep.subr.bf16.mxu0 0
    %1224 = vmatpush1.bf16.msra.mxu0 %v1082
    %1225 = vmatprep.subr.bf16.mxu0 0
    %1226 = vmatpush1.bf16.msra.mxu0 %v1081
    %1227 = vmatprep.subr.bf16.mxu0 0
    %1228 = vmatpush1.bf16.msra.mxu0 %v1080
    %1229 = vmatprep.subr.bf16.mxu0 0
    %1230 = vmatpush1.bf16.msra.mxu0 %v1079
    %1231 = vmatprep.subr.bf16.mxu0 0
    %1232 = vmatpush2.bf16.msra.mxu0 0
    %1233 = vmatprep.subr.bf16.mxu0 0
    %1234 = vmatpush2.bf16.msra.mxu0 0
    %1235 = vmatprep.subr.bf16.mxu0 0
    %1236 = vmatpush2.bf16.msra.mxu0 0
    %1237 = vmatprep.subr.bf16.mxu0 0
    %1238 = vmatpush2.bf16.msra.mxu0 0
    %1239 = vmatprep.subr.bf16.mxu0 0
    %1240 = vmatpush2.bf16.msra.mxu0 0
    %1241 = vmatprep.subr.bf16.mxu0 0
    %1242 = vmatpush2.bf16.msra.mxu0 0
    %1243 = vmatprep.subr.bf16.mxu0 0
    %1244 = vmatpush2.bf16.msra.mxu0 0
    %1245 = vmatprep.subr.bf16.mxu0 0
    %1246 = vmatpush2.bf16.msra.mxu0 0
    %1247 = vmatprep.mubr.bf16.mxu0 0
    %1248 = vmatmul.mubr.bf16.gmra.mxu0 %v1199
    %v1249 = vpop.f32.mrf.mxu0
    %v1250 = vadd.f32 %v1090, %v1249
    %v1251 = vpop.f32.mrf.mxu0
    %v1252 = vpop.f32.mrf.mxu0
    %v1253 = vadd.f32 %v1095, %v1252
    %v1254 = vpop.f32.mrf.mxu0
    %1255 = vmatprep.mubr.bf16.mxu0 0
    %1256 = vmatmul.mubr.bf16.gmra.mxu0 %v1200
    %v1257 = vpop.f32.mrf.mxu0
    %v1258 = vadd.f32 %v1100, %v1257
    %v1259 = vpop.f32.mrf.mxu0
    %v1260 = vpop.f32.mrf.mxu0
    %v1261 = vadd.f32 %v1105, %v1260
    %v1262 = vpop.f32.mrf.mxu0
    %1263 = vmatprep.mubr.bf16.mxu0 0
    %1264 = vmatmul.mubr.bf16.gmra.mxu0 %v1201
    %v1265 = vpop.f32.mrf.mxu0
    %v1266 = vadd.f32 %v1110, %v1265
    %v1267 = vpop.f32.mrf.mxu0
    %v1268 = vpop.f32.mrf.mxu0
    %v1269 = vadd.f32 %v1115, %v1268
    %v1270 = vpop.f32.mrf.mxu0
    %1271 = vmatprep.mubr.bf16.mxu0 0
    %1272 = vmatmul.mubr.bf16.gmra.mxu0 %v1202
    %v1273 = vpop.f32.mrf.mxu0
    %v1274 = vadd.f32 %v1120, %v1273
    %v1275 = vpop.f32.mrf.mxu0
    %v1276 = vpop.f32.mrf.mxu0
    %v1277 = vadd.f32 %v1125, %v1276
    %v1278 = vpop.f32.mrf.mxu0
    %1279 = vmatprep.mubr.bf16.mxu0 0
    %1280 = vmatmul.mubr.bf16.gmra.mxu0 %v1203
    %v1281 = vpop.f32.mrf.mxu0
    %v1282 = vadd.f32 %v1130, %v1281
    %v1283 = vpop.f32.mrf.mxu0
    %v1284 = vpop.f32.mrf.mxu0
    %v1285 = vadd.f32 %v1135, %v1284
    %v1286 = vpop.f32.mrf.mxu0
    %1287 = vmatprep.mubr.bf16.mxu0 0
    %1288 = vmatmul.mubr.bf16.gmra.mxu0 %v1204
    %v1289 = vpop.f32.mrf.mxu0
    %v1290 = vadd.f32 %v1140, %v1289
    %v1291 = vpop.f32.mrf.mxu0
    %v1292 = vpop.f32.mrf.mxu0
    %v1293 = vadd.f32 %v1145, %v1292
    %v1294 = vpop.f32.mrf.mxu0
    %1295 = vmatprep.mubr.bf16.mxu0 0
    %1296 = vmatmul.mubr.bf16.gmra.mxu0 %v1205
    %v1297 = vpop.f32.mrf.mxu0
    %v1298 = vadd.f32 %v1150, %v1297
    %v1299 = vpop.f32.mrf.mxu0
    %v1300 = vpop.f32.mrf.mxu0
    %v1301 = vadd.f32 %v1155, %v1300
    %v1302 = vpop.f32.mrf.mxu0
    %1303 = vmatprep.mubr.bf16.mxu0 0
    %1304 = vmatmul.mubr.bf16.gmra.mxu0 %v1206
    %v1305 = vpop.f32.mrf.mxu0
    %v1306 = vadd.f32 %v1160, %v1305
    %v1307 = vpop.f32.mrf.mxu0
    %v1308 = vpop.f32.mrf.mxu0
    %v1309 = vadd.f32 %v1165, %v1308
    %v1310 = vpop.f32.mrf.mxu0
    %1311 = vdwg.mxu0
    %v1312 = vmax.f32 %v1250, 0.0
    %v1313 = vmax.f32 %v1253, 0.0
    %v1314 = vmax.f32 %v1258, 0.0
    %v1315 = vmax.f32 %v1261, 0.0
    %v1316 = vmax.f32 %v1266, 0.0
    %v1317 = vmax.f32 %v1269, 0.0
    %v1318 = vmax.f32 %v1274, 0.0
    %v1319 = vmax.f32 %v1277, 0.0
    %v1320 = vmax.f32 %v1282, 0.0
    %v1321 = vmax.f32 %v1285, 0.0
    %v1322 = vmax.f32 %v1290, 0.0
    %v1323 = vmax.f32 %v1293, 0.0
    %v1324 = vmax.f32 %v1298, 0.0
    %v1325 = vmax.f32 %v1301, 0.0
    %v1326 = vmax.f32 %v1306, 0.0
    %v1327 = vmax.f32 %v1309, 0.0
    %1328 = vst [vmem:[#allocation2] sm:$0xff] %v1312
    %1329 = vst [vmem:[#allocation2 + $0x8] sm:$0xff] %v1313
    %1330 = vst [vmem:[#allocation2 + $0x10] sm:$0xff] %v1314
    %1331 = vst [vmem:[#allocation2 + $0x18] sm:$0xff] %v1315
    %1332 = vst [vmem:[#allocation2 + $0x20] sm:$0xff] %v1316
    %1333 = vst [vmem:[#allocation2 + $0x28] sm:$0xff] %v1317
    %1334 = vst [vmem:[#allocation2 + $0x30] sm:$0xff] %v1318
    %1335 = vst [vmem:[#allocation2 + $0x38] sm:$0xff] %v1319
    %1336 = vst [vmem:[#allocation2 + $0x40] sm:$0xff] %v1320
    %1337 = vst [vmem:[#allocation2 + $0x48] sm:$0xff] %v1321
    %1338 = vst [vmem:[#allocation2 + $0x50] sm:$0xff] %v1322
    %1339 = vst [vmem:[#allocation2 + $0x58] sm:$0xff] %v1323
    %1340 = vst [vmem:[#allocation2 + $0x60] sm:$0xff] %v1324
    %1341 = vst [vmem:[#allocation2 + $0x68] sm:$0xff] %v1325
    %1342 = vst [vmem:[#allocation2 + $0x70] sm:$0xff] %v1326
    %1343 = vst [vmem:[#allocation2 + $0x78] sm:$0xff] %v1327
    %s1344 = scalar_lea.vmem %s0, 64
    %v1345 = vld [vmem:[%s1344] sm:$0xf]
    %v1346 = vld [vmem:[%s1344 + $0x4] sm:$0xf]
    %v1347 = vld [vmem:[%s1344 + $0x8] sm:$0xf]
    %v1348 = vld [vmem:[%s1344 + $0xc] sm:$0xf]
    %v1349 = vld [vmem:[%s1344 + $0x10] sm:$0xf]
    %v1350 = vld [vmem:[%s1344 + $0x14] sm:$0xf]
    %v1351 = vld [vmem:[%s1344 + $0x18] sm:$0xf]
    %v1352 = vld [vmem:[%s1344 + $0x1c] sm:$0xf]
    %v1353 = vld [vmem:[%s1344 + $0x20] sm:$0xf]
    %v1354 = vld [vmem:[%s1344 + $0x24] sm:$0xf]
    %v1355 = vld [vmem:[%s1344 + $0x28] sm:$0xf]
    %v1356 = vld [vmem:[%s1344 + $0x2c] sm:$0xf]
    %v1357 = vld [vmem:[%s1344 + $0x30] sm:$0xf]
    %v1358 = vld [vmem:[%s1344 + $0x34] sm:$0xf]
    %v1359 = vld [vmem:[%s1344 + $0x38] sm:$0xf]
    %v1360 = vld [vmem:[%s1344 + $0x3c] sm:$0xf]
    %v1361 = vunpack.c.l.bf16 %v1345
    %v1362 = vunpack.c.l.bf16 %v1346
    %v1363 = vunpack.c.l.bf16 %v1347
    %v1364 = vunpack.c.l.bf16 %v1348
    %v1365 = vunpack.c.l.bf16 %v1349
    %v1366 = vunpack.c.l.bf16 %v1350
    %v1367 = vunpack.c.l.bf16 %v1351
    %v1368 = vunpack.c.l.bf16 %v1352
    %v1369 = vunpack.c.l.bf16 %v1353
    %v1370 = vunpack.c.l.bf16 %v1354
    %v1371 = vunpack.c.l.bf16 %v1355
    %v1372 = vunpack.c.l.bf16 %v1356
    %v1373 = vunpack.c.l.bf16 %v1357
    %v1374 = vunpack.c.l.bf16 %v1358
    %v1375 = vunpack.c.l.bf16 %v1359
    %v1376 = vunpack.c.l.bf16 %v1360
    %v1377 = vmul.f32 %v1361, %v104
    %v1378 = vmul.f32 %v1362, %v109
    %v1379 = vmul.f32 %v1363, %v114
    %v1380 = vmul.f32 %v1364, %v119
    %v1381 = vmul.f32 %v1365, %v124
    %v1382 = vmul.f32 %v1366, %v129
    %v1383 = vmul.f32 %v1367, %v134
    %v1384 = vmul.f32 %v1368, %v139
    %v1385 = vmul.f32 %v1369, %v144
    %v1386 = vmul.f32 %v1370, %v149
    %v1387 = vmul.f32 %v1371, %v154
    %v1388 = vmul.f32 %v1372, %v159
    %v1389 = vmul.f32 %v1373, %v164
    %v1390 = vmul.f32 %v1374, %v169
    %v1391 = vmul.f32 %v1375, %v174
    %v1392 = vmul.f32 %v1376, %v179
    %1393 = vrot.lane.b32.xlu0 %v1361, 3
    %v1394 = vpop.permute.xlu0 %1393
    %1395 = vrot.lane.b32.xlu0 %v1362, 3
    %v1396 = vpop.permute.xlu0 %1395
    %1397 = vrot.lane.b32.xlu0 %v1363, 3
    %v1398 = vpop.permute.xlu0 %1397
    %1399 = vrot.lane.b32.xlu0 %v1364, 3
    %v1400 = vpop.permute.xlu0 %1399
    %1401 = vrot.lane.b32.xlu0 %v1365, 3
    %v1402 = vpop.permute.xlu0 %1401
    %1403 = vrot.lane.b32.xlu0 %v1366, 3
    %v1404 = vpop.permute.xlu0 %1403
    %1405 = vrot.lane.b32.xlu0 %v1367, 3
    %v1406 = vpop.permute.xlu0 %1405
    %1407 = vrot.lane.b32.xlu0 %v1368, 3
    %v1408 = vpop.permute.xlu0 %1407
    %1409 = vrot.lane.b32.xlu0 %v1369, 3
    %v1410 = vpop.permute.xlu0 %1409
    %1411 = vrot.lane.b32.xlu0 %v1370, 3
    %v1412 = vpop.permute.xlu0 %1411
    %1413 = vrot.lane.b32.xlu0 %v1371, 3
    %v1414 = vpop.permute.xlu0 %1413
    %1415 = vrot.lane.b32.xlu0 %v1372, 3
    %v1416 = vpop.permute.xlu0 %1415
    %1417 = vrot.lane.b32.xlu0 %v1373, 3
    %v1418 = vpop.permute.xlu0 %1417
    %1419 = vrot.lane.b32.xlu0 %v1374, 3
    %v1420 = vpop.permute.xlu0 %1419
    %1421 = vrot.lane.b32.xlu0 %v1375, 3
    %v1422 = vpop.permute.xlu0 %1421
    %1423 = vrot.lane.b32.xlu0 %v1376, 3
    %v1424 = vpop.permute.xlu0 %1423
    %v1425 = vsel %vm231, %v1394, 0.0
    %v1426 = vsel %vm231, %v1396, 0.0
    %v1427 = vsel %vm231, %v1398, 0.0
    %v1428 = vsel %vm231, %v1400, 0.0
    %v1429 = vsel %vm231, %v1402, 0.0
    %v1430 = vsel %vm231, %v1404, 0.0
    %v1431 = vsel %vm231, %v1406, 0.0
    %v1432 = vsel %vm231, %v1408, 0.0
    %v1433 = vsel %vm231, %v1410, 0.0
    %v1434 = vsel %vm231, %v1412, 0.0
    %v1435 = vsel %vm231, %v1414, 0.0
    %v1436 = vsel %vm231, %v1416, 0.0
    %v1437 = vsel %vm231, %v1418, 0.0
    %v1438 = vsel %vm231, %v1420, 0.0
    %v1439 = vsel %vm231, %v1422, 0.0
    %v1440 = vsel %vm231, %v1424, 0.0
    %v1441 = vmul.f32 %v1425, %v250
    %v1442 = vmul.f32 %v1426, %v254
    %v1443 = vmul.f32 %v1427, %v258
    %v1444 = vmul.f32 %v1428, %v262
    %v1445 = vmul.f32 %v1429, %v266
    %v1446 = vmul.f32 %v1430, %v270
    %v1447 = vmul.f32 %v1431, %v274
    %v1448 = vmul.f32 %v1432, %v278
    %v1449 = vmul.f32 %v1433, %v282
    %v1450 = vmul.f32 %v1434, %v286
    %v1451 = vmul.f32 %v1435, %v290
    %v1452 = vmul.f32 %v1436, %v294
    %v1453 = vmul.f32 %v1437, %v298
    %v1454 = vmul.f32 %v1438, %v302
    %v1455 = vmul.f32 %v1439, %v306
    %v1456 = vmul.f32 %v1440, %v310
    %v1457 = vadd.f32 %v1377, %v1441
    %v1458 = vadd.f32 %v1378, %v1442
    %v1459 = vadd.f32 %v1379, %v1443
    %v1460 = vadd.f32 %v1380, %v1444
    %v1461 = vadd.f32 %v1381, %v1445
    %v1462 = vadd.f32 %v1382, %v1446
    %v1463 = vadd.f32 %v1383, %v1447
    %v1464 = vadd.f32 %v1384, %v1448
    %v1465 = vadd.f32 %v1385, %v1449
    %v1466 = vadd.f32 %v1386, %v1450
    %v1467 = vadd.f32 %v1387, %v1451
    %v1468 = vadd.f32 %v1388, %v1452
    %v1469 = vadd.f32 %v1389, %v1453
    %v1470 = vadd.f32 %v1390, %v1454
    %v1471 = vadd.f32 %v1391, %v1455
    %v1472 = vadd.f32 %v1392, %v1456
    %1473 = vrot.lane.b32.xlu0 %v1361, 2
    %v1474 = vpop.permute.xlu0 %1473
    %1475 = vrot.lane.b32.xlu0 %v1362, 2
    %v1476 = vpop.permute.xlu0 %1475
    %1477 = vrot.lane.b32.xlu0 %v1363, 2
    %v1478 = vpop.permute.xlu0 %1477
    %1479 = vrot.lane.b32.xlu0 %v1364, 2
    %v1480 = vpop.permute.xlu0 %1479
    %1481 = vrot.lane.b32.xlu0 %v1365, 2
    %v1482 = vpop.permute.xlu0 %1481
    %1483 = vrot.lane.b32.xlu0 %v1366, 2
    %v1484 = vpop.permute.xlu0 %1483
    %1485 = vrot.lane.b32.xlu0 %v1367, 2
    %v1486 = vpop.permute.xlu0 %1485
    %1487 = vrot.lane.b32.xlu0 %v1368, 2
    %v1488 = vpop.permute.xlu0 %1487
    %1489 = vrot.lane.b32.xlu0 %v1369, 2
    %v1490 = vpop.permute.xlu0 %1489
    %1491 = vrot.lane.b32.xlu0 %v1370, 2
    %v1492 = vpop.permute.xlu0 %1491
    %1493 = vrot.lane.b32.xlu0 %v1371, 2
    %v1494 = vpop.permute.xlu0 %1493
    %1495 = vrot.lane.b32.xlu0 %v1372, 2
    %v1496 = vpop.permute.xlu0 %1495
    %1497 = vrot.lane.b32.xlu0 %v1373, 2
    %v1498 = vpop.permute.xlu0 %1497
    %1499 = vrot.lane.b32.xlu0 %v1374, 2
    %v1500 = vpop.permute.xlu0 %1499
    %1501 = vrot.lane.b32.xlu0 %v1375, 2
    %v1502 = vpop.permute.xlu0 %1501
    %1503 = vrot.lane.b32.xlu0 %v1376, 2
    %v1504 = vpop.permute.xlu0 %1503
    %v1505 = vsel %vm378, %v1474, 0.0
    %v1506 = vsel %vm378, %v1476, 0.0
    %v1507 = vsel %vm378, %v1478, 0.0
    %v1508 = vsel %vm378, %v1480, 0.0
    %v1509 = vsel %vm378, %v1482, 0.0
    %v1510 = vsel %vm378, %v1484, 0.0
    %v1511 = vsel %vm378, %v1486, 0.0
    %v1512 = vsel %vm378, %v1488, 0.0
    %v1513 = vsel %vm378, %v1490, 0.0
    %v1514 = vsel %vm378, %v1492, 0.0
    %v1515 = vsel %vm378, %v1494, 0.0
    %v1516 = vsel %vm378, %v1496, 0.0
    %v1517 = vsel %vm378, %v1498, 0.0
    %v1518 = vsel %vm378, %v1500, 0.0
    %v1519 = vsel %vm378, %v1502, 0.0
    %v1520 = vsel %vm378, %v1504, 0.0
    %v1521 = vmul.f32 %v1505, %v397
    %v1522 = vmul.f32 %v1506, %v401
    %v1523 = vmul.f32 %v1507, %v405
    %v1524 = vmul.f32 %v1508, %v409
    %v1525 = vmul.f32 %v1509, %v413
    %v1526 = vmul.f32 %v1510, %v417
    %v1527 = vmul.f32 %v1511, %v421
    %v1528 = vmul.f32 %v1512, %v425
    %v1529 = vmul.f32 %v1513, %v429
    %v1530 = vmul.f32 %v1514, %v433
    %v1531 = vmul.f32 %v1515, %v437
    %v1532 = vmul.f32 %v1516, %v441
    %v1533 = vmul.f32 %v1517, %v445
    %v1534 = vmul.f32 %v1518, %v449
    %v1535 = vmul.f32 %v1519, %v453
    %v1536 = vmul.f32 %v1520, %v457
    %v1537 = vadd.f32 %v1457, %v1521
    %v1538 = vadd.f32 %v1458, %v1522
    %v1539 = vadd.f32 %v1459, %v1523
    %v1540 = vadd.f32 %v1460, %v1524
    %v1541 = vadd.f32 %v1461, %v1525
    %v1542 = vadd.f32 %v1462, %v1526
    %v1543 = vadd.f32 %v1463, %v1527
    %v1544 = vadd.f32 %v1464, %v1528
    %v1545 = vadd.f32 %v1465, %v1529
    %v1546 = vadd.f32 %v1466, %v1530
    %v1547 = vadd.f32 %v1467, %v1531
    %v1548 = vadd.f32 %v1468, %v1532
    %v1549 = vadd.f32 %v1469, %v1533
    %v1550 = vadd.f32 %v1470, %v1534
    %v1551 = vadd.f32 %v1471, %v1535
    %v1552 = vadd.f32 %v1472, %v1536
    %1553 = vrot.lane.b32.xlu0 %v1361, 1
    %v1554 = vpop.permute.xlu0 %1553
    %1555 = vrot.lane.b32.xlu0 %v1362, 1
    %v1556 = vpop.permute.xlu0 %1555
    %1557 = vrot.lane.b32.xlu0 %v1363, 1
    %v1558 = vpop.permute.xlu0 %1557
    %1559 = vrot.lane.b32.xlu0 %v1364, 1
    %v1560 = vpop.permute.xlu0 %1559
    %1561 = vrot.lane.b32.xlu0 %v1365, 1
    %v1562 = vpop.permute.xlu0 %1561
    %1563 = vrot.lane.b32.xlu0 %v1366, 1
    %v1564 = vpop.permute.xlu0 %1563
    %1565 = vrot.lane.b32.xlu0 %v1367, 1
    %v1566 = vpop.permute.xlu0 %1565
    %1567 = vrot.lane.b32.xlu0 %v1368, 1
    %v1568 = vpop.permute.xlu0 %1567
    %1569 = vrot.lane.b32.xlu0 %v1369, 1
    %v1570 = vpop.permute.xlu0 %1569
    %1571 = vrot.lane.b32.xlu0 %v1370, 1
    %v1572 = vpop.permute.xlu0 %1571
    %1573 = vrot.lane.b32.xlu0 %v1371, 1
    %v1574 = vpop.permute.xlu0 %1573
    %1575 = vrot.lane.b32.xlu0 %v1372, 1
    %v1576 = vpop.permute.xlu0 %1575
    %1577 = vrot.lane.b32.xlu0 %v1373, 1
    %v1578 = vpop.permute.xlu0 %1577
    %1579 = vrot.lane.b32.xlu0 %v1374, 1
    %v1580 = vpop.permute.xlu0 %1579
    %1581 = vrot.lane.b32.xlu0 %v1375, 1
    %v1582 = vpop.permute.xlu0 %1581
    %1583 = vrot.lane.b32.xlu0 %v1376, 1
    %v1584 = vpop.permute.xlu0 %1583
    %v1585 = vsel %vm525, %v1554, 0.0
    %v1586 = vsel %vm525, %v1556, 0.0
    %v1587 = vsel %vm525, %v1558, 0.0
    %v1588 = vsel %vm525, %v1560, 0.0
    %v1589 = vsel %vm525, %v1562, 0.0
    %v1590 = vsel %vm525, %v1564, 0.0
    %v1591 = vsel %vm525, %v1566, 0.0
    %v1592 = vsel %vm525, %v1568, 0.0
    %v1593 = vsel %vm525, %v1570, 0.0
    %v1594 = vsel %vm525, %v1572, 0.0
    %v1595 = vsel %vm525, %v1574, 0.0
    %v1596 = vsel %vm525, %v1576, 0.0
    %v1597 = vsel %vm525, %v1578, 0.0
    %v1598 = vsel %vm525, %v1580, 0.0
    %v1599 = vsel %vm525, %v1582, 0.0
    %v1600 = vsel %vm525, %v1584, 0.0
    %v1601 = vmul.f32 %v1585, %v544
    %v1602 = vmul.f32 %v1586, %v548
    %v1603 = vmul.f32 %v1587, %v552
    %v1604 = vmul.f32 %v1588, %v556
    %v1605 = vmul.f32 %v1589, %v560
    %v1606 = vmul.f32 %v1590, %v564
    %v1607 = vmul.f32 %v1591, %v568
    %v1608 = vmul.f32 %v1592, %v572
    %v1609 = vmul.f32 %v1593, %v576
    %v1610 = vmul.f32 %v1594, %v580
    %v1611 = vmul.f32 %v1595, %v584
    %v1612 = vmul.f32 %v1596, %v588
    %v1613 = vmul.f32 %v1597, %v592
    %v1614 = vmul.f32 %v1598, %v596
    %v1615 = vmul.f32 %v1599, %v600
    %v1616 = vmul.f32 %v1600, %v604
    %v1617 = vadd.f32 %v1537, %v1601
    %v1618 = vadd.f32 %v1538, %v1602
    %v1619 = vadd.f32 %v1539, %v1603
    %v1620 = vadd.f32 %v1540, %v1604
    %v1621 = vadd.f32 %v1541, %v1605
    %v1622 = vadd.f32 %v1542, %v1606
    %v1623 = vadd.f32 %v1543, %v1607
    %v1624 = vadd.f32 %v1544, %v1608
    %v1625 = vadd.f32 %v1545, %v1609
    %v1626 = vadd.f32 %v1546, %v1610
    %v1627 = vadd.f32 %v1547, %v1611
    %v1628 = vadd.f32 %v1548, %v1612
    %v1629 = vadd.f32 %v1549, %v1613
    %v1630 = vadd.f32 %v1550, %v1614
    %v1631 = vadd.f32 %v1551, %v1615
    %v1632 = vadd.f32 %v1552, %v1616
    %1633 = vrot.lane.b32.xlu0 %v1361, 127
    %v1634 = vpop.permute.xlu0 %1633
    %1635 = vrot.lane.b32.xlu0 %v1362, 127
    %v1636 = vpop.permute.xlu0 %1635
    %1637 = vrot.lane.b32.xlu0 %v1363, 127
    %v1638 = vpop.permute.xlu0 %1637
    %1639 = vrot.lane.b32.xlu0 %v1364, 127
    %v1640 = vpop.permute.xlu0 %1639
    %1641 = vrot.lane.b32.xlu0 %v1365, 127
    %v1642 = vpop.permute.xlu0 %1641
    %1643 = vrot.lane.b32.xlu0 %v1366, 127
    %v1644 = vpop.permute.xlu0 %1643
    %1645 = vrot.lane.b32.xlu0 %v1367, 127
    %v1646 = vpop.permute.xlu0 %1645
    %1647 = vrot.lane.b32.xlu0 %v1368, 127
    %v1648 = vpop.permute.xlu0 %1647
    %1649 = vrot.lane.b32.xlu0 %v1369, 127
    %v1650 = vpop.permute.xlu0 %1649
    %1651 = vrot.lane.b32.xlu0 %v1370, 127
    %v1652 = vpop.permute.xlu0 %1651
    %1653 = vrot.lane.b32.xlu0 %v1371, 127
    %v1654 = vpop.permute.xlu0 %1653
    %1655 = vrot.lane.b32.xlu0 %v1372, 127
    %v1656 = vpop.permute.xlu0 %1655
    %1657 = vrot.lane.b32.xlu0 %v1373, 127
    %v1658 = vpop.permute.xlu0 %1657
    %1659 = vrot.lane.b32.xlu0 %v1374, 127
    %v1660 = vpop.permute.xlu0 %1659
    %1661 = vrot.lane.b32.xlu0 %v1375, 127
    %v1662 = vpop.permute.xlu0 %1661
    %1663 = vrot.lane.b32.xlu0 %v1376, 127
    %v1664 = vpop.permute.xlu0 %1663
    %v1665 = vsel %vm672, %v1634, 0.0
    %v1666 = vsel %vm672, %v1636, 0.0
    %v1667 = vsel %vm672, %v1638, 0.0
    %v1668 = vsel %vm672, %v1640, 0.0
    %v1669 = vsel %vm672, %v1642, 0.0
    %v1670 = vsel %vm672, %v1644, 0.0
    %v1671 = vsel %vm672, %v1646, 0.0
    %v1672 = vsel %vm672, %v1648, 0.0
    %v1673 = vsel %vm672, %v1650, 0.0
    %v1674 = vsel %vm672, %v1652, 0.0
    %v1675 = vsel %vm672, %v1654, 0.0
    %v1676 = vsel %vm672, %v1656, 0.0
    %v1677 = vsel %vm672, %v1658, 0.0
    %v1678 = vsel %vm672, %v1660, 0.0
    %v1679 = vsel %vm672, %v1662, 0.0
    %v1680 = vsel %vm672, %v1664, 0.0
    %v1681 = vmul.f32 %v1665, %v691
    %v1682 = vmul.f32 %v1666, %v695
    %v1683 = vmul.f32 %v1667, %v699
    %v1684 = vmul.f32 %v1668, %v703
    %v1685 = vmul.f32 %v1669, %v707
    %v1686 = vmul.f32 %v1670, %v711
    %v1687 = vmul.f32 %v1671, %v715
    %v1688 = vmul.f32 %v1672, %v719
    %v1689 = vmul.f32 %v1673, %v723
    %v1690 = vmul.f32 %v1674, %v727
    %v1691 = vmul.f32 %v1675, %v731
    %v1692 = vmul.f32 %v1676, %v735
    %v1693 = vmul.f32 %v1677, %v739
    %v1694 = vmul.f32 %v1678, %v743
    %v1695 = vmul.f32 %v1679, %v747
    %v1696 = vmul.f32 %v1680, %v751
    %v1697 = vadd.f32 %v1617, %v1681
    %v1698 = vadd.f32 %v1618, %v1682
    %v1699 = vadd.f32 %v1619, %v1683
    %v1700 = vadd.f32 %v1620, %v1684
    %v1701 = vadd.f32 %v1621, %v1685
    %v1702 = vadd.f32 %v1622, %v1686
    %v1703 = vadd.f32 %v1623, %v1687
    %v1704 = vadd.f32 %v1624, %v1688
    %v1705 = vadd.f32 %v1625, %v1689
    %v1706 = vadd.f32 %v1626, %v1690
    %v1707 = vadd.f32 %v1627, %v1691
    %v1708 = vadd.f32 %v1628, %v1692
    %v1709 = vadd.f32 %v1629, %v1693
    %v1710 = vadd.f32 %v1630, %v1694
    %v1711 = vadd.f32 %v1631, %v1695
    %v1712 = vadd.f32 %v1632, %v1696
    %1713 = vrot.lane.b32.xlu0 %v1361, 126
    %v1714 = vpop.permute.xlu0 %1713
    %1715 = vrot.lane.b32.xlu0 %v1362, 126
    %v1716 = vpop.permute.xlu0 %1715
    %1717 = vrot.lane.b32.xlu0 %v1363, 126
    %v1718 = vpop.permute.xlu0 %1717
    %1719 = vrot.lane.b32.xlu0 %v1364, 126
    %v1720 = vpop.permute.xlu0 %1719
    %1721 = vrot.lane.b32.xlu0 %v1365, 126
    %v1722 = vpop.permute.xlu0 %1721
    %1723 = vrot.lane.b32.xlu0 %v1366, 126
    %v1724 = vpop.permute.xlu0 %1723
    %1725 = vrot.lane.b32.xlu0 %v1367, 126
    %v1726 = vpop.permute.xlu0 %1725
    %1727 = vrot.lane.b32.xlu0 %v1368, 126
    %v1728 = vpop.permute.xlu0 %1727
    %1729 = vrot.lane.b32.xlu0 %v1369, 126
    %v1730 = vpop.permute.xlu0 %1729
    %1731 = vrot.lane.b32.xlu0 %v1370, 126
    %v1732 = vpop.permute.xlu0 %1731
    %1733 = vrot.lane.b32.xlu0 %v1371, 126
    %v1734 = vpop.permute.xlu0 %1733
    %1735 = vrot.lane.b32.xlu0 %v1372, 126
    %v1736 = vpop.permute.xlu0 %1735
    %1737 = vrot.lane.b32.xlu0 %v1373, 126
    %v1738 = vpop.permute.xlu0 %1737
    %1739 = vrot.lane.b32.xlu0 %v1374, 126
    %v1740 = vpop.permute.xlu0 %1739
    %1741 = vrot.lane.b32.xlu0 %v1375, 126
    %v1742 = vpop.permute.xlu0 %1741
    %1743 = vrot.lane.b32.xlu0 %v1376, 126
    %v1744 = vpop.permute.xlu0 %1743
    %v1745 = vsel %vm819, %v1714, 0.0
    %v1746 = vsel %vm819, %v1716, 0.0
    %v1747 = vsel %vm819, %v1718, 0.0
    %v1748 = vsel %vm819, %v1720, 0.0
    %v1749 = vsel %vm819, %v1722, 0.0
    %v1750 = vsel %vm819, %v1724, 0.0
    %v1751 = vsel %vm819, %v1726, 0.0
    %v1752 = vsel %vm819, %v1728, 0.0
    %v1753 = vsel %vm819, %v1730, 0.0
    %v1754 = vsel %vm819, %v1732, 0.0
    %v1755 = vsel %vm819, %v1734, 0.0
    %v1756 = vsel %vm819, %v1736, 0.0
    %v1757 = vsel %vm819, %v1738, 0.0
    %v1758 = vsel %vm819, %v1740, 0.0
    %v1759 = vsel %vm819, %v1742, 0.0
    %v1760 = vsel %vm819, %v1744, 0.0
    %v1761 = vmul.f32 %v1745, %v838
    %v1762 = vmul.f32 %v1746, %v842
    %v1763 = vmul.f32 %v1747, %v846
    %v1764 = vmul.f32 %v1748, %v850
    %v1765 = vmul.f32 %v1749, %v854
    %v1766 = vmul.f32 %v1750, %v858
    %v1767 = vmul.f32 %v1751, %v862
    %v1768 = vmul.f32 %v1752, %v866
    %v1769 = vmul.f32 %v1753, %v870
    %v1770 = vmul.f32 %v1754, %v874
    %v1771 = vmul.f32 %v1755, %v878
    %v1772 = vmul.f32 %v1756, %v882
    %v1773 = vmul.f32 %v1757, %v886
    %v1774 = vmul.f32 %v1758, %v890
    %v1775 = vmul.f32 %v1759, %v894
    %v1776 = vmul.f32 %v1760, %v898
    %v1777 = vadd.f32 %v1697, %v1761
    %v1778 = vadd.f32 %v1698, %v1762
    %v1779 = vadd.f32 %v1699, %v1763
    %v1780 = vadd.f32 %v1700, %v1764
    %v1781 = vadd.f32 %v1701, %v1765
    %v1782 = vadd.f32 %v1702, %v1766
    %v1783 = vadd.f32 %v1703, %v1767
    %v1784 = vadd.f32 %v1704, %v1768
    %v1785 = vadd.f32 %v1705, %v1769
    %v1786 = vadd.f32 %v1706, %v1770
    %v1787 = vadd.f32 %v1707, %v1771
    %v1788 = vadd.f32 %v1708, %v1772
    %v1789 = vadd.f32 %v1709, %v1773
    %v1790 = vadd.f32 %v1710, %v1774
    %v1791 = vadd.f32 %v1711, %v1775
    %v1792 = vadd.f32 %v1712, %v1776
    %1793 = vrot.lane.b32.xlu0 %v1361, 125
    %v1794 = vpop.permute.xlu0 %1793
    %1795 = vrot.lane.b32.xlu0 %v1362, 125
    %v1796 = vpop.permute.xlu0 %1795
    %1797 = vrot.lane.b32.xlu0 %v1363, 125
    %v1798 = vpop.permute.xlu0 %1797
    %1799 = vrot.lane.b32.xlu0 %v1364, 125
    %v1800 = vpop.permute.xlu0 %1799
    %1801 = vrot.lane.b32.xlu0 %v1365, 125
    %v1802 = vpop.permute.xlu0 %1801
    %1803 = vrot.lane.b32.xlu0 %v1366, 125
    %v1804 = vpop.permute.xlu0 %1803
    %1805 = vrot.lane.b32.xlu0 %v1367, 125
    %v1806 = vpop.permute.xlu0 %1805
    %1807 = vrot.lane.b32.xlu0 %v1368, 125
    %v1808 = vpop.permute.xlu0 %1807
    %1809 = vrot.lane.b32.xlu0 %v1369, 125
    %v1810 = vpop.permute.xlu0 %1809
    %1811 = vrot.lane.b32.xlu0 %v1370, 125
    %v1812 = vpop.permute.xlu0 %1811
    %1813 = vrot.lane.b32.xlu0 %v1371, 125
    %v1814 = vpop.permute.xlu0 %1813
    %1815 = vrot.lane.b32.xlu0 %v1372, 125
    %v1816 = vpop.permute.xlu0 %1815
    %1817 = vrot.lane.b32.xlu0 %v1373, 125
    %v1818 = vpop.permute.xlu0 %1817
    %1819 = vrot.lane.b32.xlu0 %v1374, 125
    %v1820 = vpop.permute.xlu0 %1819
    %1821 = vrot.lane.b32.xlu0 %v1375, 125
    %v1822 = vpop.permute.xlu0 %1821
    %1823 = vrot.lane.b32.xlu0 %v1376, 125
    %v1824 = vpop.permute.xlu0 %1823
    %v1825 = vsel %vm966, %v1794, 0.0
    %v1826 = vsel %vm966, %v1796, 0.0
    %v1827 = vsel %vm966, %v1798, 0.0
    %v1828 = vsel %vm966, %v1800, 0.0
    %v1829 = vsel %vm966, %v1802, 0.0
    %v1830 = vsel %vm966, %v1804, 0.0
    %v1831 = vsel %vm966, %v1806, 0.0
    %v1832 = vsel %vm966, %v1808, 0.0
    %v1833 = vsel %vm966, %v1810, 0.0
    %v1834 = vsel %vm966, %v1812, 0.0
    %v1835 = vsel %vm966, %v1814, 0.0
    %v1836 = vsel %vm966, %v1816, 0.0
    %v1837 = vsel %vm966, %v1818, 0.0
    %v1838 = vsel %vm966, %v1820, 0.0
    %v1839 = vsel %vm966, %v1822, 0.0
    %v1840 = vsel %vm966, %v1824, 0.0
    %v1841 = vmul.f32 %v1825, %v985
    %v1842 = vmul.f32 %v1826, %v989
    %v1843 = vmul.f32 %v1827, %v993
    %v1844 = vmul.f32 %v1828, %v997
    %v1845 = vmul.f32 %v1829, %v1001
    %v1846 = vmul.f32 %v1830, %v1005
    %v1847 = vmul.f32 %v1831, %v1009
    %v1848 = vmul.f32 %v1832, %v1013
    %v1849 = vmul.f32 %v1833, %v1017
    %v1850 = vmul.f32 %v1834, %v1021
    %v1851 = vmul.f32 %v1835, %v1025
    %v1852 = vmul.f32 %v1836, %v1029
    %v1853 = vmul.f32 %v1837, %v1033
    %v1854 = vmul.f32 %v1838, %v1037
    %v1855 = vmul.f32 %v1839, %v1041
    %v1856 = vmul.f32 %v1840, %v1045
    %v1857 = vadd.f32 %v1777, %v1841
    %v1858 = vadd.f32 %v1778, %v1842
    %v1859 = vadd.f32 %v1779, %v1843
    %v1860 = vadd.f32 %v1780, %v1844
    %v1861 = vadd.f32 %v1781, %v1845
    %v1862 = vadd.f32 %v1782, %v1846
    %v1863 = vadd.f32 %v1783, %v1847
    %v1864 = vadd.f32 %v1784, %v1848
    %v1865 = vadd.f32 %v1785, %v1849
    %v1866 = vadd.f32 %v1786, %v1850
    %v1867 = vadd.f32 %v1787, %v1851
    %v1868 = vadd.f32 %v1788, %v1852
    %v1869 = vadd.f32 %v1789, %v1853
    %v1870 = vadd.f32 %v1790, %v1854
    %v1871 = vadd.f32 %v1791, %v1855
    %v1872 = vadd.f32 %v1792, %v1856
    %v1873 = vpack.c.bf16 %v1858, %v1857
    %v1874 = vpack.c.bf16 %v1860, %v1859
    %v1875 = vpack.c.bf16 %v1862, %v1861
    %v1876 = vpack.c.bf16 %v1864, %v1863
    %v1877 = vpack.c.bf16 %v1866, %v1865
    %v1878 = vpack.c.bf16 %v1868, %v1867
    %v1879 = vpack.c.bf16 %v1870, %v1869
    %v1880 = vpack.c.bf16 %v1872, %v1871
    %1881 = vmatprep.subr.bf16.mxu0 0
    %1882 = vmatpush1.bf16.msra.mxu0 %v1880
    %1883 = vmatprep.subr.bf16.mxu0 0
    %1884 = vmatpush1.bf16.msra.mxu0 %v1879
    %1885 = vmatprep.subr.bf16.mxu0 0
    %1886 = vmatpush1.bf16.msra.mxu0 %v1878
    %1887 = vmatprep.subr.bf16.mxu0 0
    %1888 = vmatpush1.bf16.msra.mxu0 %v1877
    %1889 = vmatprep.subr.bf16.mxu0 0
    %1890 = vmatpush1.bf16.msra.mxu0 %v1876
    %1891 = vmatprep.subr.bf16.mxu0 0
    %1892 = vmatpush1.bf16.msra.mxu0 %v1875
    %1893 = vmatprep.subr.bf16.mxu0 0
    %1894 = vmatpush1.bf16.msra.mxu0 %v1874
    %1895 = vmatprep.subr.bf16.mxu0 0
    %1896 = vmatpush1.bf16.msra.mxu0 %v1873
    %1897 = vmatprep.subr.bf16.mxu0 0
    %1898 = vmatpush2.bf16.msra.mxu0 0
    %1899 = vmatprep.subr.bf16.mxu0 0
    %1900 = vmatpush2.bf16.msra.mxu0 0
    %1901 = vmatprep.subr.bf16.mxu0 0
    %1902 = vmatpush2.bf16.msra.mxu0 0
    %1903 = vmatprep.subr.bf16.mxu0 0
    %1904 = vmatpush2.bf16.msra.mxu0 0
    %1905 = vmatprep.subr.bf16.mxu0 0
    %1906 = vmatpush2.bf16.msra.mxu0 0
    %1907 = vmatprep.subr.bf16.mxu0 0
    %1908 = vmatpush2.bf16.msra.mxu0 0
    %1909 = vmatprep.subr.bf16.mxu0 0
    %1910 = vmatpush2.bf16.msra.mxu0 0
    %1911 = vmatprep.subr.bf16.mxu0 0
    %1912 = vmatpush2.bf16.msra.mxu0 0
    %1913 = vmatprep.mubr.bf16.mxu0 0
    %1914 = vmatmul.mubr.bf16.gmra.mxu0 %v1199
    %v1915 = vpop.f32.mrf.mxu0
    %v1916 = vadd.f32 %v1090, %v1915
    %v1917 = vpop.f32.mrf.mxu0
    %v1918 = vpop.f32.mrf.mxu0
    %v1919 = vadd.f32 %v1095, %v1918
    %v1920 = vpop.f32.mrf.mxu0
    %1921 = vmatprep.mubr.bf16.mxu0 0
    %1922 = vmatmul.mubr.bf16.gmra.mxu0 %v1200
    %v1923 = vpop.f32.mrf.mxu0
    %v1924 = vadd.f32 %v1100, %v1923
    %v1925 = vpop.f32.mrf.mxu0
    %v1926 = vpop.f32.mrf.mxu0
    %v1927 = vadd.f32 %v1105, %v1926
    %v1928 = vpop.f32.mrf.mxu0
    %1929 = vmatprep.mubr.bf16.mxu0 0
    %1930 = vmatmul.mubr.bf16.gmra.mxu0 %v1201
    %v1931 = vpop.f32.mrf.mxu0
    %v1932 = vadd.f32 %v1110, %v1931
    %v1933 = vpop.f32.mrf.mxu0
    %v1934 = vpop.f32.mrf.mxu0
    %v1935 = vadd.f32 %v1115, %v1934
    %v1936 = vpop.f32.mrf.mxu0
    %1937 = vmatprep.mubr.bf16.mxu0 0
    %1938 = vmatmul.mubr.bf16.gmra.mxu0 %v1202
    %v1939 = vpop.f32.mrf.mxu0
    %v1940 = vadd.f32 %v1120, %v1939
    %v1941 = vpop.f32.mrf.mxu0
    %v1942 = vpop.f32.mrf.mxu0
    %v1943 = vadd.f32 %v1125, %v1942
    %v1944 = vpop.f32.mrf.mxu0
    %1945 = vmatprep.mubr.bf16.mxu0 0
    %1946 = vmatmul.mubr.bf16.gmra.mxu0 %v1203
    %v1947 = vpop.f32.mrf.mxu0
    %v1948 = vadd.f32 %v1130, %v1947
    %v1949 = vpop.f32.mrf.mxu0
    %v1950 = vpop.f32.mrf.mxu0
    %v1951 = vadd.f32 %v1135, %v1950
    %v1952 = vpop.f32.mrf.mxu0
    %1953 = vmatprep.mubr.bf16.mxu0 0
    %1954 = vmatmul.mubr.bf16.gmra.mxu0 %v1204
    %v1955 = vpop.f32.mrf.mxu0
    %v1956 = vadd.f32 %v1140, %v1955
    %v1957 = vpop.f32.mrf.mxu0
    %v1958 = vpop.f32.mrf.mxu0
    %v1959 = vadd.f32 %v1145, %v1958
    %v1960 = vpop.f32.mrf.mxu0
    %1961 = vmatprep.mubr.bf16.mxu0 0
    %1962 = vmatmul.mubr.bf16.gmra.mxu0 %v1205
    %v1963 = vpop.f32.mrf.mxu0
    %v1964 = vadd.f32 %v1150, %v1963
    %v1965 = vpop.f32.mrf.mxu0
    %v1966 = vpop.f32.mrf.mxu0
    %v1967 = vadd.f32 %v1155, %v1966
    %v1968 = vpop.f32.mrf.mxu0
    %1969 = vmatprep.mubr.bf16.mxu0 0
    %1970 = vmatmul.mubr.bf16.gmra.mxu0 %v1206
    %v1971 = vpop.f32.mrf.mxu0
    %v1972 = vadd.f32 %v1160, %v1971
    %v1973 = vpop.f32.mrf.mxu0
    %v1974 = vpop.f32.mrf.mxu0
    %v1975 = vadd.f32 %v1165, %v1974
    %v1976 = vpop.f32.mrf.mxu0
    %1977 = vdwg.mxu0
    %v1978 = vmax.f32 %v1916, 0.0
    %v1979 = vmax.f32 %v1919, 0.0
    %v1980 = vmax.f32 %v1924, 0.0
    %v1981 = vmax.f32 %v1927, 0.0
    %v1982 = vmax.f32 %v1932, 0.0
    %v1983 = vmax.f32 %v1935, 0.0
    %v1984 = vmax.f32 %v1940, 0.0
    %v1985 = vmax.f32 %v1943, 0.0
    %v1986 = vmax.f32 %v1948, 0.0
    %v1987 = vmax.f32 %v1951, 0.0
    %v1988 = vmax.f32 %v1956, 0.0
    %v1989 = vmax.f32 %v1959, 0.0
    %v1990 = vmax.f32 %v1964, 0.0
    %v1991 = vmax.f32 %v1967, 0.0
    %v1992 = vmax.f32 %v1972, 0.0
    %v1993 = vmax.f32 %v1975, 0.0
    %s1994 = scalar_lea.vmem [#allocation2], 128
    %1995 = vst [vmem:[%s1994] sm:$0xff] %v1978
    %1996 = vst [vmem:[%s1994 + $0x8] sm:$0xff] %v1979
    %1997 = vst [vmem:[%s1994 + $0x10] sm:$0xff] %v1980
    %1998 = vst [vmem:[%s1994 + $0x18] sm:$0xff] %v1981
    %1999 = vst [vmem:[%s1994 + $0x20] sm:$0xff] %v1982
    %2000 = vst [vmem:[%s1994 + $0x28] sm:$0xff] %v1983
    %2001 = vst [vmem:[%s1994 + $0x30] sm:$0xff] %v1984
    %2002 = vst [vmem:[%s1994 + $0x38] sm:$0xff] %v1985
    %2003 = vst [vmem:[%s1994 + $0x40] sm:$0xff] %v1986
    %2004 = vst [vmem:[%s1994 + $0x48] sm:$0xff] %v1987
    %2005 = vst [vmem:[%s1994 + $0x50] sm:$0xff] %v1988
    %2006 = vst [vmem:[%s1994 + $0x58] sm:$0xff] %v1989
    %2007 = vst [vmem:[%s1994 + $0x60] sm:$0xff] %v1990
    %2008 = vst [vmem:[%s1994 + $0x68] sm:$0xff] %v1991
    %2009 = vst [vmem:[%s1994 + $0x70] sm:$0xff] %v1992
    %2010 = vst [vmem:[%s1994 + $0x78] sm:$0xff] %v1993
    // Predicated region
    $region18: #{tpu_custom_call.1} parent=1 // pred_check
      _
    $region19: #{tpu_custom_call.1} parent=1 // pred_check_branch
      %2012 = sbr.rel (0) target = $region21
    $region20: #{tpu_custom_call.1} parent=1 // pred_region
      %s2014 = ssub.s32 4096, 4096
      %2015 = vsyncadd [#allocation3], %s2014
      %s2016 = sshll.u32 [#allocation2], 4
      %s2017 = int_to_ptr.vmem [resolvable:$true] %s2016
      %2022 = dma.vmem_to_hbm [thread:$0]  %s2017, 4096, %s4, [#allocation3], 128, 128, 8
    $region21: #{tpu_custom_call.1} parent=1 // pred_fallthru
      _
    // Predicated region
    $region22: #{tpu_custom_call.1} parent=1 // pred_check
      _
    $region23: #{tpu_custom_call.1} parent=1 // pred_check_branch
      %2024 = sbr.rel (0) target = $region25
    $region24: #{tpu_custom_call.1} parent=1 // pred_region
      %2025 = dma.done [#allocation3], 4096
    $region25: #{tpu_custom_call.1} parent=1 // pred_fallthru
      _
    %2026 = vsyncpa [#allocation3], 1

</llo_original>
